<compile_context>
chip_gen: v7x
topology: tpu7x:2x2x1
jax: 0.10.0
libtpu: 0.0.40
codegen_flags: <defaults>
</compile_context>

<pallas_src>
import functools

import jax
import jax.numpy as jnp
from jax.experimental import pallas as pl
from jax.experimental.pallas import tpu as pltpu


def _mha_kernel(x_ref, wq_ref, wk_ref, wv_ref, bq_ref, bk_ref, bv_ref,
                wo_ref, bo_ref, out_ref, attn_ref, *,
                batch_block, seq_len, n_heads, head_dim, scale, mm_dtype):
    """One batch block per grid step.

    x_ref        : (batch_block*T, E)   rows = (b, t) row-major       VMEM
    w{q,k,v}_ref : (E, E)               lane-aligned projection        VMEM
    b{q,k,v}_ref : (1, E)                                              VMEM
    wo_ref       : (E, E),  bo_ref : (1, E)                            VMEM
    out_ref      : (batch_block*T, E)                                  VMEM
    attn_ref     : (batch_block, H, T, T)                              VMEM
    """
    B_blk, T, H, D = batch_block, seq_len, n_heads, head_dim

    x = x_ref[...]                                            # (B_blk*T, E)

    # ---- QKV projections: one big MXU pass each over all B_blk*T rows ----
    q = jnp.dot(x, wq_ref[...], preferred_element_type=jnp.float32) + bq_ref[...]
    k = jnp.dot(x, wk_ref[...], preferred_element_type=jnp.float32) + bk_ref[...]
    v = jnp.dot(x, wv_ref[...], preferred_element_type=jnp.float32) + bv_ref[...]

    def to_heads(m):                                          # (T, H*D) -> (H, T, D)
        # One-time head layout fix-up via static slices + stack (Mosaic-safe).
        return jnp.stack([m[:, h * D:(h + 1) * D] for h in range(H)], axis=0)

    attn_blocks = []
    ctx_rows = []
    for b in range(B_blk):                                    # static unroll (small)
        r0 = b * T
        qh = to_heads(q[r0:r0 + T, :]).astype(mm_dtype)       # (H, T, D)
        kh = to_heads(k[r0:r0 + T, :]).astype(mm_dtype)
        vh = to_heads(v[r0:r0 + T, :]).astype(mm_dtype)

        # Head-batched scaled dot-product scores: single dot_general, no .T.
        s = jnp.einsum('htd,hsd->hts', qh, kh,
                       preferred_element_type=jnp.float32) * scale   # (H, T, T)

        # Softmax over keys (f32 math); EUP approximate reciprocal for the denom.
        s = s - jnp.max(s, axis=-1, keepdims=True)
        p = jnp.exp(s)
        p = p * pl.reciprocal(jnp.sum(p, axis=-1, keepdims=True), approx=True)
        attn_blocks.append(p)

        # attn_drop is Dropout(p=0.0) -> identity.
        ctx_h = jnp.einsum('hts,hsd->htd', p.astype(mm_dtype), vh,
                           preferred_element_type=jnp.float32)        # (H, T, D)
        # torch transpose(1,2)+flatten(2) == heads back onto the feature axis.
        ctx_rows.append(jnp.concatenate([ctx_h[h] for h in range(H)], axis=-1))

    # Single coalesced attention store per grid step (instead of B*H small ones).
    attn_ref[...] = jnp.stack(attn_blocks, axis=0)            # (B_blk, H, T, T)

    # ---- output projection: one MXU pass over all rows ----
    ctx = jnp.concatenate(ctx_rows, axis=0).astype(mm_dtype)  # (B_blk*T, E)
    out = jnp.dot(ctx, wo_ref[...], preferred_element_type=jnp.float32) + bo_ref[...]
    # embedder_drop is Dropout(p=0.0) -> identity.
    out_ref[...] = out.astype(out_ref.dtype)


def multihead_attention(x, w_qkv, b_qkv, w_proj, b_proj, n_heads, *,
                        batch_block=None, matmul_dtype=None):
    """Pallas forward.  x: (B, T, E).  Returns (output (B, T, E), attn (B, H, T, T)).

    batch_block : batch elements folded into one grid step.  Default = B (one
                  grid step -> minimal per-step overhead).  On v7x pass B // 2
                  so both TensorCores get a parallel grid step.
    matmul_dtype: dtype fed to the MXU (e.g. jnp.bfloat16 on v6e/v7x).  Softmax
                  and all accumulation stay in float32.
    """
    B, T, E = x.shape
    assert E % n_heads == 0
    D = E // n_heads
    scale = D ** (-0.5)

    if batch_block is None:
        batch_block = B
    assert B % batch_block == 0
    n_blocks = B // batch_block
    mm_dtype = x.dtype if matmul_dtype is None else matmul_dtype

    # Host-side layout plumbing (free): flatten (B, T) rows, split the fused QKV
    # weight into three lane-aligned (E, E) projections, reshape biases to (1, E).
    x2 = x.reshape(B * T, E).astype(mm_dtype)
    wq = w_qkv[:, 0 * E:1 * E].astype(mm_dtype)
    wk = w_qkv[:, 1 * E:2 * E].astype(mm_dtype)
    wv = w_qkv[:, 2 * E:3 * E].astype(mm_dtype)
    bq = b_qkv[0 * E:1 * E].reshape(1, E).astype(jnp.float32)
    bk = b_qkv[1 * E:2 * E].reshape(1, E).astype(jnp.float32)
    bv = b_qkv[2 * E:3 * E].reshape(1, E).astype(jnp.float32)
    wo = w_proj.astype(mm_dtype)
    bo = b_proj.reshape(1, E).astype(jnp.float32)

    kernel = functools.partial(
        _mha_kernel, batch_block=batch_block, seq_len=T, n_heads=n_heads,
        head_dim=D, scale=scale, mm_dtype=mm_dtype)

    rows_blk = batch_block * T
    const_spec = lambda shape: pl.BlockSpec(shape, lambda b: (0,) * len(shape))

    # TODO(synk): at real DINO shapes (T ~ 197-785, H ~ 6-12) the full
    # (B, H, T, T) attention output must be query-tiled flash-style (or made
    # optional) to fit v7x's 64 MiB VMEM; at these toy shapes it is tiny.
    out2, attn = pl.pallas_call(
        kernel,
        out_shape=(
            jax.ShapeDtypeStruct((B * T, E), x.dtype),
            jax.ShapeDtypeStruct((B, n_heads, T, T), jnp.float32),
        ),
        grid=(n_blocks,),
        in_specs=[
            pl.BlockSpec((rows_blk, E), lambda b: (b, 0)),     # x rows
            const_spec((E, E)),                                # Wq
            const_spec((E, E)),                                # Wk
            const_spec((E, E)),                                # Wv
            const_spec((1, E)),                                # bq
            const_spec((1, E)),                                # bk
            const_spec((1, E)),                                # bv
            const_spec((E, E)),                                # Wo
            const_spec((1, E)),                                # bo
        ],
        out_specs=(
            pl.BlockSpec((rows_blk, E), lambda b: (b, 0)),                       # out rows
            pl.BlockSpec((batch_block, n_heads, T, T), lambda b: (b, 0, 0, 0)),  # attn
        ),
        compiler_params=pltpu.CompilerParams(
            dimension_semantics=("parallel",),
        ),
    )(x2, wq, wk, wv, bq, bk, bv, wo, bo)

    return out2.reshape(B, T, E), attn


def _reference(x, w_qkv, b_qkv, w_proj, b_proj, n_heads):
    """Pure-JAX reference mirroring the PyTorch forward exactly (f32)."""
    B, T, E = x.shape
    D = E // n_heads
    scale = D ** (-0.5)
    qkv = x @ w_qkv + b_qkv                                  # (B, T, 3E)
    qkv = qkv.reshape(B, T, 3, n_heads, D).transpose(2, 0, 3, 1, 4)
    q, k, v = qkv[0], qkv[1], qkv[2]                         # (B, H, T, D)
    attn = jax.nn.softmax(q @ k.transpose(0, 1, 3, 2) * scale, axis=-1)
    ctx = (attn @ v).transpose(0, 2, 1, 3).reshape(B, T, E)
    out = ctx @ w_proj + b_proj
    return out, attn


if __name__ == "__main__":
    # Small shapes consistent with the module: io_dim=32, n_heads=4 (head_dim=8)
    B, T, E = 2, 8, 32
    n_heads = 4

    key = jax.random.PRNGKey(0)
    kx, k1, k2, k3, k4 = jax.random.split(key, 5)

    x = jax.random.normal(kx, (B, T, E), dtype=jnp.float32)

    # Deterministic parameter init (uniform, torch-Linear style bound = 1/sqrt(fan_in))
    bound = 1.0 / (E ** 0.5)
    w_qkv = jax.random.uniform(k1, (E, 3 * E), jnp.float32, -bound, bound)
    b_qkv = jax.random.uniform(k2, (3 * E,), jnp.float32, -bound, bound)
    w_proj = jax.random.uniform(k3, (E, E), jnp.float32, -bound, bound)
    b_proj = jax.random.uniform(k4, (E,), jnp.float32, -bound, bound)

    out_ref, attn_ref = _reference(x, w_qkv, b_qkv, w_proj, b_proj, n_heads)

    # f32 MXU path, whole batch folded into a single grid step.
    out, attn = multihead_attention(x, w_qkv, b_qkv, w_proj, b_proj, n_heads)
    jax.block_until_ready((out, attn))
    assert out.shape == (B, T, E) and attn.shape == (B, n_heads, T, T)
    # Only deviation from the f32 reference is the EUP approximate reciprocal
    # in the softmax denominator (relative error ~1e-4) -> 1e-2 tolerance.
    assert jnp.allclose(out, out_ref, atol=1e-2, rtol=1e-2)
    assert jnp.allclose(attn, attn_ref, atol=1e-2, rtol=1e-2)

    # bf16 MXU path (v6e/v7x fast path) with a 2-way "parallel" grid so v7x's
    # two TensorCores each get a step.  bf16 operands -> ~2-3 significant digits.
    out_bf, attn_bf = multihead_attention(
        x, w_qkv, b_qkv, w_proj, b_proj, n_heads,
        batch_block=1, matmul_dtype=jnp.bfloat16)
    jax.block_until_ready((out_bf, attn_bf))
    assert jnp.allclose(out_bf, out_ref, atol=5e-2, rtol=5e-2)
    assert jnp.allclose(attn_bf, attn_ref, atol=5e-2, rtol=5e-2)

    print("KERNEL_OK")
</pallas_src>

<mosaic_0001>
module attributes {stable_mosaic.version = 11 : i64} {
  func.func @_mha_kernel(%arg0: i32, %arg1: memref<16x32xf32, #tpu.memory_space<vmem>>, %arg2: memref<32x32xf32, #tpu.memory_space<vmem>>, %arg3: memref<32x32xf32, #tpu.memory_space<vmem>>, %arg4: memref<32x32xf32, #tpu.memory_space<vmem>>, %arg5: memref<1x32xf32, #tpu.memory_space<vmem>>, %arg6: memref<1x32xf32, #tpu.memory_space<vmem>>, %arg7: memref<1x32xf32, #tpu.memory_space<vmem>>, %arg8: memref<32x32xf32, #tpu.memory_space<vmem>>, %arg9: memref<1x32xf32, #tpu.memory_space<vmem>>, %arg10: memref<16x32xf32, #tpu.memory_space<vmem>>, %arg11: memref<2x4x8x8xf32, #tpu.memory_space<vmem>>) attributes {dimension_semantics = [#tpu.dimension_semantics<parallel>], iteration_bounds = array<i64: 1>, scalar_prefetch = 0 : i64, scratch_operands = 0 : i64, tpu.core_type = #tpu.core_type<tc>, window_params = [{transform_indices = @transform_0, window_bounds = array<i64: 16, 32>}, {pipeline_mode = #tpu.pipeline_mode<synchronous>, transform_indices = @transform_1, window_bounds = array<i64: 32, 32>}, {pipeline_mode = #tpu.pipeline_mode<synchronous>, transform_indices = @transform_2, window_bounds = array<i64: 32, 32>}, {pipeline_mode = #tpu.pipeline_mode<synchronous>, transform_indices = @transform_3, window_bounds = array<i64: 32, 32>}, {pipeline_mode = #tpu.pipeline_mode<synchronous>, transform_indices = @transform_4, window_bounds = array<i64: 1, 32>}, {pipeline_mode = #tpu.pipeline_mode<synchronous>, transform_indices = @transform_5, window_bounds = array<i64: 1, 32>}, {pipeline_mode = #tpu.pipeline_mode<synchronous>, transform_indices = @transform_6, window_bounds = array<i64: 1, 32>}, {pipeline_mode = #tpu.pipeline_mode<synchronous>, transform_indices = @transform_7, window_bounds = array<i64: 32, 32>}, {pipeline_mode = #tpu.pipeline_mode<synchronous>, transform_indices = @transform_8, window_bounds = array<i64: 1, 32>}, {transform_indices = @transform_9, window_bounds = array<i64: 16, 32>}, {transform_indices = @transform_10, window_bounds = array<i64: 2, 4, 8, 8>}]} {
    %c0 = arith.constant 0 : index
    %c0_0 = arith.constant 0 : index
    %0 = vector.load %arg1[%c0, %c0_0] : memref<16x32xf32, #tpu.memory_space<vmem>>, vector<16x32xf32>
    %c0_1 = arith.constant 0 : index
    %c0_2 = arith.constant 0 : index
    %1 = vector.load %arg2[%c0_1, %c0_2] : memref<32x32xf32, #tpu.memory_space<vmem>>, vector<32x32xf32>
    %cst = arith.constant dense<0.000000e+00> : vector<16x32xf32>
    %2 = tpu.matmul %0, %1, %cst {dimension_numbers = #tpu.dot_dimension_numbers<[1], [0], [0], [1], [0, 0, 1, 1], [], []>} : vector<16x32xf32>, vector<32x32xf32>, vector<16x32xf32> -> vector<16x32xf32>
    %c0_3 = arith.constant 0 : index
    %c0_4 = arith.constant 0 : index
    %3 = vector.load %arg5[%c0_3, %c0_4] : memref<1x32xf32, #tpu.memory_space<vmem>>, vector<1x32xf32>
    %4 = vector.broadcast %3 : vector<1x32xf32> to vector<16x32xf32>
    %5 = arith.addf %2, %4 : vector<16x32xf32>
    %c0_5 = arith.constant 0 : index
    %c0_6 = arith.constant 0 : index
    %6 = vector.load %arg3[%c0_5, %c0_6] : memref<32x32xf32, #tpu.memory_space<vmem>>, vector<32x32xf32>
    %cst_7 = arith.constant dense<0.000000e+00> : vector<16x32xf32>
    %7 = tpu.matmul %0, %6, %cst_7 {dimension_numbers = #tpu.dot_dimension_numbers<[1], [0], [0], [1], [0, 0, 1, 1], [], []>} : vector<16x32xf32>, vector<32x32xf32>, vector<16x32xf32> -> vector<16x32xf32>
    %c0_8 = arith.constant 0 : index
    %c0_9 = arith.constant 0 : index
    %8 = vector.load %arg6[%c0_8, %c0_9] : memref<1x32xf32, #tpu.memory_space<vmem>>, vector<1x32xf32>
    %9 = vector.broadcast %8 : vector<1x32xf32> to vector<16x32xf32>
    %10 = arith.addf %7, %9 : vector<16x32xf32>
    %c0_10 = arith.constant 0 : index
    %c0_11 = arith.constant 0 : index
    %11 = vector.load %arg4[%c0_10, %c0_11] : memref<32x32xf32, #tpu.memory_space<vmem>>, vector<32x32xf32>
    %cst_12 = arith.constant dense<0.000000e+00> : vector<16x32xf32>
    %12 = tpu.matmul %0, %11, %cst_12 {dimension_numbers = #tpu.dot_dimension_numbers<[1], [0], [0], [1], [0, 0, 1, 1], [], []>} : vector<16x32xf32>, vector<32x32xf32>, vector<16x32xf32> -> vector<16x32xf32>
    %c0_13 = arith.constant 0 : index
    %c0_14 = arith.constant 0 : index
    %13 = vector.load %arg7[%c0_13, %c0_14] : memref<1x32xf32, #tpu.memory_space<vmem>>, vector<1x32xf32>
    %14 = vector.broadcast %13 : vector<1x32xf32> to vector<16x32xf32>
    %15 = arith.addf %12, %14 : vector<16x32xf32>
    %16 = vector.extract_strided_slice %5 {offsets = [0, 0], sizes = [8, 32], strides = [1, 1]} : vector<16x32xf32> to vector<8x32xf32>
    %17 = vector.extract_strided_slice %16 {offsets = [0, 0], sizes = [8, 8], strides = [1, 1]} : vector<8x32xf32> to vector<8x8xf32>
    %18 = vector.extract_strided_slice %16 {offsets = [0, 8], sizes = [8, 8], strides = [1, 1]} : vector<8x32xf32> to vector<8x8xf32>
    %19 = vector.extract_strided_slice %16 {offsets = [0, 16], sizes = [8, 8], strides = [1, 1]} : vector<8x32xf32> to vector<8x8xf32>
    %20 = vector.extract_strided_slice %16 {offsets = [0, 24], sizes = [8, 8], strides = [1, 1]} : vector<8x32xf32> to vector<8x8xf32>
    %21 = vector.shape_cast %17 : vector<8x8xf32> to vector<1x8x8xf32>
    %22 = vector.shape_cast %18 : vector<8x8xf32> to vector<1x8x8xf32>
    %23 = vector.shape_cast %19 : vector<8x8xf32> to vector<1x8x8xf32>
    %24 = vector.shape_cast %20 : vector<8x8xf32> to vector<1x8x8xf32>
    %25 = tpu.concatenate %21, %22, %23, %24 in 0 : vector<1x8x8xf32>, vector<1x8x8xf32>, vector<1x8x8xf32>, vector<1x8x8xf32> -> vector<4x8x8xf32>
    %26 = vector.extract_strided_slice %10 {offsets = [0, 0], sizes = [8, 32], strides = [1, 1]} : vector<16x32xf32> to vector<8x32xf32>
    %27 = vector.extract_strided_slice %26 {offsets = [0, 0], sizes = [8, 8], strides = [1, 1]} : vector<8x32xf32> to vector<8x8xf32>
    %28 = vector.extract_strided_slice %26 {offsets = [0, 8], sizes = [8, 8], strides = [1, 1]} : vector<8x32xf32> to vector<8x8xf32>
    %29 = vector.extract_strided_slice %26 {offsets = [0, 16], sizes = [8, 8], strides = [1, 1]} : vector<8x32xf32> to vector<8x8xf32>
    %30 = vector.extract_strided_slice %26 {offsets = [0, 24], sizes = [8, 8], strides = [1, 1]} : vector<8x32xf32> to vector<8x8xf32>
    %31 = vector.shape_cast %27 : vector<8x8xf32> to vector<1x8x8xf32>
    %32 = vector.shape_cast %28 : vector<8x8xf32> to vector<1x8x8xf32>
    %33 = vector.shape_cast %29 : vector<8x8xf32> to vector<1x8x8xf32>
    %34 = vector.shape_cast %30 : vector<8x8xf32> to vector<1x8x8xf32>
    %35 = tpu.concatenate %31, %32, %33, %34 in 0 : vector<1x8x8xf32>, vector<1x8x8xf32>, vector<1x8x8xf32>, vector<1x8x8xf32> -> vector<4x8x8xf32>
    %36 = vector.extract_strided_slice %15 {offsets = [0, 0], sizes = [8, 32], strides = [1, 1]} : vector<16x32xf32> to vector<8x32xf32>
    %37 = vector.extract_strided_slice %36 {offsets = [0, 0], sizes = [8, 8], strides = [1, 1]} : vector<8x32xf32> to vector<8x8xf32>
    %38 = vector.extract_strided_slice %36 {offsets = [0, 8], sizes = [8, 8], strides = [1, 1]} : vector<8x32xf32> to vector<8x8xf32>
    %39 = vector.extract_strided_slice %36 {offsets = [0, 16], sizes = [8, 8], strides = [1, 1]} : vector<8x32xf32> to vector<8x8xf32>
    %40 = vector.extract_strided_slice %36 {offsets = [0, 24], sizes = [8, 8], strides = [1, 1]} : vector<8x32xf32> to vector<8x8xf32>
    %41 = vector.shape_cast %37 : vector<8x8xf32> to vector<1x8x8xf32>
    %42 = vector.shape_cast %38 : vector<8x8xf32> to vector<1x8x8xf32>
    %43 = vector.shape_cast %39 : vector<8x8xf32> to vector<1x8x8xf32>
    %44 = vector.shape_cast %40 : vector<8x8xf32> to vector<1x8x8xf32>
    %45 = tpu.concatenate %41, %42, %43, %44 in 0 : vector<1x8x8xf32>, vector<1x8x8xf32>, vector<1x8x8xf32>, vector<1x8x8xf32> -> vector<4x8x8xf32>
    "tpu.trace_start"() <{level = 10 : i32, message = "htd,hsd->hts"}> : () -> ()
    %cst_15 = arith.constant dense<0.000000e+00> : vector<4x8x8xf32>
    %46 = tpu.matmul %25, %35, %cst_15 {dimension_numbers = #tpu.dot_dimension_numbers<[2], [2], [1], [1], [0, 0, 0, 1, 1, 1], [0], [0]>} : vector<4x8x8xf32>, vector<4x8x8xf32>, vector<4x8x8xf32> -> vector<4x8x8xf32>
    "tpu.trace_stop"() : () -> ()
    %cst_16 = arith.constant 0.353553385 : f32
    %47 = vector.broadcast %cst_16 : f32 to vector<4x8x8xf32>
    %48 = arith.mulf %46, %47 : vector<4x8x8xf32>
    %cst_17 = arith.constant dense<0xFF800000> : vector<4x8xf32>
    %49 = vector.multi_reduction <maximumf>, %48, %cst_17 [2] : vector<4x8x8xf32> to vector<4x8xf32>
    %50 = vector.shape_cast %49 : vector<4x8xf32> to vector<4x8x1xf32>
    %51 = vector.broadcast %50 : vector<4x8x1xf32> to vector<4x8x8xf32>
    %52 = arith.subf %48, %51 : vector<4x8x8xf32>
    %53 = math.exp %52 : vector<4x8x8xf32>
    %cst_18 = arith.constant dense<0.000000e+00> : vector<4x8xf32>
    %54 = vector.multi_reduction <add>, %53, %cst_18 [2] : vector<4x8x8xf32> to vector<4x8xf32>
    %55 = vector.shape_cast %54 : vector<4x8xf32> to vector<4x8x1xf32>
    %56 = tpu.reciprocal %55 {approx = true} : vector<4x8x1xf32> -> vector<4x8x1xf32>
    %57 = vector.broadcast %56 : vector<4x8x1xf32> to vector<4x8x8xf32>
    %58 = arith.mulf %53, %57 : vector<4x8x8xf32>
    "tpu.trace_start"() <{level = 10 : i32, message = "hts,hsd->htd"}> : () -> ()
    %cst_19 = arith.constant dense<0.000000e+00> : vector<4x8x8xf32>
    %59 = tpu.matmul %58, %45, %cst_19 {dimension_numbers = #tpu.dot_dimension_numbers<[2], [1], [1], [2], [0, 0, 0, 1, 1, 2], [0], [0]>} : vector<4x8x8xf32>, vector<4x8x8xf32>, vector<4x8x8xf32> -> vector<4x8x8xf32>
    "tpu.trace_stop"() : () -> ()
    %60 = vector.extract_strided_slice %59 {offsets = [0, 0, 0], sizes = [1, 8, 8], strides = [1, 1, 1]} : vector<4x8x8xf32> to vector<1x8x8xf32>
    %61 = vector.shape_cast %60 : vector<1x8x8xf32> to vector<8x8xf32>
    %62 = vector.extract_strided_slice %59 {offsets = [1, 0, 0], sizes = [1, 8, 8], strides = [1, 1, 1]} : vector<4x8x8xf32> to vector<1x8x8xf32>
    %63 = vector.shape_cast %62 : vector<1x8x8xf32> to vector<8x8xf32>
    %64 = vector.extract_strided_slice %59 {offsets = [2, 0, 0], sizes = [1, 8, 8], strides = [1, 1, 1]} : vector<4x8x8xf32> to vector<1x8x8xf32>
    %65 = vector.shape_cast %64 : vector<1x8x8xf32> to vector<8x8xf32>
    %66 = vector.extract_strided_slice %59 {offsets = [3, 0, 0], sizes = [1, 8, 8], strides = [1, 1, 1]} : vector<4x8x8xf32> to vector<1x8x8xf32>
    %67 = vector.shape_cast %66 : vector<1x8x8xf32> to vector<8x8xf32>
    %68 = tpu.concatenate %61, %63, %65, %67 in 1 : vector<8x8xf32>, vector<8x8xf32>, vector<8x8xf32>, vector<8x8xf32> -> vector<8x32xf32>
    %69 = vector.extract_strided_slice %5 {offsets = [8, 0], sizes = [8, 32], strides = [1, 1]} : vector<16x32xf32> to vector<8x32xf32>
    %70 = vector.extract_strided_slice %69 {offsets = [0, 0], sizes = [8, 8], strides = [1, 1]} : vector<8x32xf32> to vector<8x8xf32>
    %71 = vector.extract_strided_slice %69 {offsets = [0, 8], sizes = [8, 8], strides = [1, 1]} : vector<8x32xf32> to vector<8x8xf32>
    %72 = vector.extract_strided_slice %69 {offsets = [0, 16], sizes = [8, 8], strides = [1, 1]} : vector<8x32xf32> to vector<8x8xf32>
    %73 = vector.extract_strided_slice %69 {offsets = [0, 24], sizes = [8, 8], strides = [1, 1]} : vector<8x32xf32> to vector<8x8xf32>
    %74 = vector.shape_cast %70 : vector<8x8xf32> to vector<1x8x8xf32>
    %75 = vector.shape_cast %71 : vector<8x8xf32> to vector<1x8x8xf32>
    %76 = vector.shape_cast %72 : vector<8x8xf32> to vector<1x8x8xf32>
    %77 = vector.shape_cast %73 : vector<8x8xf32> to vector<1x8x8xf32>
    %78 = tpu.concatenate %74, %75, %76, %77 in 0 : vector<1x8x8xf32>, vector<1x8x8xf32>, vector<1x8x8xf32>, vector<1x8x8xf32> -> vector<4x8x8xf32>
    %79 = vector.extract_strided_slice %10 {offsets = [8, 0], sizes = [8, 32], strides = [1, 1]} : vector<16x32xf32> to vector<8x32xf32>
    %80 = vector.extract_strided_slice %79 {offsets = [0, 0], sizes = [8, 8], strides = [1, 1]} : vector<8x32xf32> to vector<8x8xf32>
    %81 = vector.extract_strided_slice %79 {offsets = [0, 8], sizes = [8, 8], strides = [1, 1]} : vector<8x32xf32> to vector<8x8xf32>
    %82 = vector.extract_strided_slice %79 {offsets = [0, 16], sizes = [8, 8], strides = [1, 1]} : vector<8x32xf32> to vector<8x8xf32>
    %83 = vector.extract_strided_slice %79 {offsets = [0, 24], sizes = [8, 8], strides = [1, 1]} : vector<8x32xf32> to vector<8x8xf32>
    %84 = vector.shape_cast %80 : vector<8x8xf32> to vector<1x8x8xf32>
    %85 = vector.shape_cast %81 : vector<8x8xf32> to vector<1x8x8xf32>
    %86 = vector.shape_cast %82 : vector<8x8xf32> to vector<1x8x8xf32>
    %87 = vector.shape_cast %83 : vector<8x8xf32> to vector<1x8x8xf32>
    %88 = tpu.concatenate %84, %85, %86, %87 in 0 : vector<1x8x8xf32>, vector<1x8x8xf32>, vector<1x8x8xf32>, vector<1x8x8xf32> -> vector<4x8x8xf32>
    %89 = vector.extract_strided_slice %15 {offsets = [8, 0], sizes = [8, 32], strides = [1, 1]} : vector<16x32xf32> to vector<8x32xf32>
    %90 = vector.extract_strided_slice %89 {offsets = [0, 0], sizes = [8, 8], strides = [1, 1]} : vector<8x32xf32> to vector<8x8xf32>
    %91 = vector.extract_strided_slice %89 {offsets = [0, 8], sizes = [8, 8], strides = [1, 1]} : vector<8x32xf32> to vector<8x8xf32>
    %92 = vector.extract_strided_slice %89 {offsets = [0, 16], sizes = [8, 8], strides = [1, 1]} : vector<8x32xf32> to vector<8x8xf32>
    %93 = vector.extract_strided_slice %89 {offsets = [0, 24], sizes = [8, 8], strides = [1, 1]} : vector<8x32xf32> to vector<8x8xf32>
    %94 = vector.shape_cast %90 : vector<8x8xf32> to vector<1x8x8xf32>
    %95 = vector.shape_cast %91 : vector<8x8xf32> to vector<1x8x8xf32>
    %96 = vector.shape_cast %92 : vector<8x8xf32> to vector<1x8x8xf32>
    %97 = vector.shape_cast %93 : vector<8x8xf32> to vector<1x8x8xf32>
    %98 = tpu.concatenate %94, %95, %96, %97 in 0 : vector<1x8x8xf32>, vector<1x8x8xf32>, vector<1x8x8xf32>, vector<1x8x8xf32> -> vector<4x8x8xf32>
    "tpu.trace_start"() <{level = 10 : i32, message = "htd,hsd->hts"}> : () -> ()
    %cst_20 = arith.constant dense<0.000000e+00> : vector<4x8x8xf32>
    %99 = tpu.matmul %78, %88, %cst_20 {dimension_numbers = #tpu.dot_dimension_numbers<[2], [2], [1], [1], [0, 0, 0, 1, 1, 1], [0], [0]>} : vector<4x8x8xf32>, vector<4x8x8xf32>, vector<4x8x8xf32> -> vector<4x8x8xf32>
    "tpu.trace_stop"() : () -> ()
    %cst_21 = arith.constant 0.353553385 : f32
    %100 = vector.broadcast %cst_21 : f32 to vector<4x8x8xf32>
    %101 = arith.mulf %99, %100 : vector<4x8x8xf32>
    %cst_22 = arith.constant dense<0xFF800000> : vector<4x8xf32>
    %102 = vector.multi_reduction <maximumf>, %101, %cst_22 [2] : vector<4x8x8xf32> to vector<4x8xf32>
    %103 = vector.shape_cast %102 : vector<4x8xf32> to vector<4x8x1xf32>
    %104 = vector.broadcast %103 : vector<4x8x1xf32> to vector<4x8x8xf32>
    %105 = arith.subf %101, %104 : vector<4x8x8xf32>
    %106 = math.exp %105 : vector<4x8x8xf32>
    %cst_23 = arith.constant dense<0.000000e+00> : vector<4x8xf32>
    %107 = vector.multi_reduction <add>, %106, %cst_23 [2] : vector<4x8x8xf32> to vector<4x8xf32>
    %108 = vector.shape_cast %107 : vector<4x8xf32> to vector<4x8x1xf32>
    %109 = tpu.reciprocal %108 {approx = true} : vector<4x8x1xf32> -> vector<4x8x1xf32>
    %110 = vector.broadcast %109 : vector<4x8x1xf32> to vector<4x8x8xf32>
    %111 = arith.mulf %106, %110 : vector<4x8x8xf32>
    "tpu.trace_start"() <{level = 10 : i32, message = "hts,hsd->htd"}> : () -> ()
    %cst_24 = arith.constant dense<0.000000e+00> : vector<4x8x8xf32>
    %112 = tpu.matmul %111, %98, %cst_24 {dimension_numbers = #tpu.dot_dimension_numbers<[2], [1], [1], [2], [0, 0, 0, 1, 1, 2], [0], [0]>} : vector<4x8x8xf32>, vector<4x8x8xf32>, vector<4x8x8xf32> -> vector<4x8x8xf32>
    "tpu.trace_stop"() : () -> ()
    %113 = vector.extract_strided_slice %112 {offsets = [0, 0, 0], sizes = [1, 8, 8], strides = [1, 1, 1]} : vector<4x8x8xf32> to vector<1x8x8xf32>
    %114 = vector.shape_cast %113 : vector<1x8x8xf32> to vector<8x8xf32>
    %115 = vector.extract_strided_slice %112 {offsets = [1, 0, 0], sizes = [1, 8, 8], strides = [1, 1, 1]} : vector<4x8x8xf32> to vector<1x8x8xf32>
    %116 = vector.shape_cast %115 : vector<1x8x8xf32> to vector<8x8xf32>
    %117 = vector.extract_strided_slice %112 {offsets = [2, 0, 0], sizes = [1, 8, 8], strides = [1, 1, 1]} : vector<4x8x8xf32> to vector<1x8x8xf32>
    %118 = vector.shape_cast %117 : vector<1x8x8xf32> to vector<8x8xf32>
    %119 = vector.extract_strided_slice %112 {offsets = [3, 0, 0], sizes = [1, 8, 8], strides = [1, 1, 1]} : vector<4x8x8xf32> to vector<1x8x8xf32>
    %120 = vector.shape_cast %119 : vector<1x8x8xf32> to vector<8x8xf32>
    %121 = tpu.concatenate %114, %116, %118, %120 in 1 : vector<8x8xf32>, vector<8x8xf32>, vector<8x8xf32>, vector<8x8xf32> -> vector<8x32xf32>
    %122 = vector.shape_cast %58 : vector<4x8x8xf32> to vector<1x4x8x8xf32>
    %123 = vector.shape_cast %111 : vector<4x8x8xf32> to vector<1x4x8x8xf32>
    %124 = tpu.concatenate %122, %123 in 0 : vector<1x4x8x8xf32>, vector<1x4x8x8xf32> -> vector<2x4x8x8xf32>
    %c0_25 = arith.constant 0 : index
    %c0_26 = arith.constant 0 : index
    %c0_27 = arith.constant 0 : index
    %c0_28 = arith.constant 0 : index
    %125 = vector.load %arg11[%c0_25, %c0_26, %c0_27, %c0_28] : memref<2x4x8x8xf32, #tpu.memory_space<vmem>>, vector<2x4x8x8xf32>
    tpu.vector_store %arg11[%c0_25, %c0_26, %c0_27, %c0_28], %124 {strides = array<i32>} : memref<2x4x8x8xf32, #tpu.memory_space<vmem>>, vector<2x4x8x8xf32>,
    %126 = tpu.concatenate %68, %121 in 0 : vector<8x32xf32>, vector<8x32xf32> -> vector<16x32xf32>
    %c0_29 = arith.constant 0 : index
    %c0_30 = arith.constant 0 : index
    %127 = vector.load %arg8[%c0_29, %c0_30] : memref<32x32xf32, #tpu.memory_space<vmem>>, vector<32x32xf32>
    %cst_31 = arith.constant dense<0.000000e+00> : vector<16x32xf32>
    %128 = tpu.matmul %126, %127, %cst_31 {dimension_numbers = #tpu.dot_dimension_numbers<[1], [0], [0], [1], [0, 0, 1, 1], [], []>} : vector<16x32xf32>, vector<32x32xf32>, vector<16x32xf32> -> vector<16x32xf32>
    %c0_32 = arith.constant 0 : index
    %c0_33 = arith.constant 0 : index
    %129 = vector.load %arg9[%c0_32, %c0_33] : memref<1x32xf32, #tpu.memory_space<vmem>>, vector<1x32xf32>
    %130 = vector.broadcast %129 : vector<1x32xf32> to vector<16x32xf32>
    %131 = arith.addf %128, %130 : vector<16x32xf32>
    %c0_34 = arith.constant 0 : index
    %c0_35 = arith.constant 0 : index
    %132 = vector.load %arg10[%c0_34, %c0_35] : memref<16x32xf32, #tpu.memory_space<vmem>>, vector<16x32xf32>
    tpu.vector_store %arg10[%c0_34, %c0_35], %131 {strides = array<i32>} : memref<16x32xf32, #tpu.memory_space<vmem>>, vector<16x32xf32>,
    return
  }
  func.func @transform_0(%arg0: i32) -> (i32, i32) {
    %c0_i32 = arith.constant 0 : i32
    %c0_i32_0 = arith.constant 0 : i32
    return %arg0, %c0_i32 : i32, i32
  }
  func.func @transform_1(%arg0: i32) -> (i32, i32) {
    %c0_i32 = arith.constant 0 : i32
    %c0_i32_0 = arith.constant 0 : i32
    %c0_i32_1 = arith.constant 0 : i32
    return %c0_i32, %c0_i32_0 : i32, i32
  }
  func.func @transform_2(%arg0: i32) -> (i32, i32) {
    %c0_i32 = arith.constant 0 : i32
    %c0_i32_0 = arith.constant 0 : i32
    %c0_i32_1 = arith.constant 0 : i32
    return %c0_i32, %c0_i32_0 : i32, i32
  }
  func.func @transform_3(%arg0: i32) -> (i32, i32) {
    %c0_i32 = arith.constant 0 : i32
    %c0_i32_0 = arith.constant 0 : i32
    %c0_i32_1 = arith.constant 0 : i32
    return %c0_i32, %c0_i32_0 : i32, i32
  }
  func.func @transform_4(%arg0: i32) -> (i32, i32) {
    %c0_i32 = arith.constant 0 : i32
    %c0_i32_0 = arith.constant 0 : i32
    %c0_i32_1 = arith.constant 0 : i32
    return %c0_i32, %c0_i32_0 : i32, i32
  }
  func.func @transform_5(%arg0: i32) -> (i32, i32) {
    %c0_i32 = arith.constant 0 : i32
    %c0_i32_0 = arith.constant 0 : i32
    %c0_i32_1 = arith.constant 0 : i32
    return %c0_i32, %c0_i32_0 : i32, i32
  }
  func.func @transform_6(%arg0: i32) -> (i32, i32) {
    %c0_i32 = arith.constant 0 : i32
    %c0_i32_0 = arith.constant 0 : i32
    %c0_i32_1 = arith.constant 0 : i32
    return %c0_i32, %c0_i32_0 : i32, i32
  }
  func.func @transform_7(%arg0: i32) -> (i32, i32) {
    %c0_i32 = arith.constant 0 : i32
    %c0_i32_0 = arith.constant 0 : i32
    %c0_i32_1 = arith.constant 0 : i32
    return %c0_i32, %c0_i32_0 : i32, i32
  }
  func.func @transform_8(%arg0: i32) -> (i32, i32) {
    %c0_i32 = arith.constant 0 : i32
    %c0_i32_0 = arith.constant 0 : i32
    %c0_i32_1 = arith.constant 0 : i32
    return %c0_i32, %c0_i32_0 : i32, i32
  }
  func.func @transform_9(%arg0: i32) -> (i32, i32) {
    %c0_i32 = arith.constant 0 : i32
    %c0_i32_0 = arith.constant 0 : i32
    return %arg0, %c0_i32 : i32, i32
  }
  func.func @transform_10(%arg0: i32) -> (i32, i32, i32, i32) {
    %c0_i32 = arith.constant 0 : i32
    %c0_i32_0 = arith.constant 0 : i32
    %c0_i32_1 = arith.constant 0 : i32
    %c0_i32_2 = arith.constant 0 : i32
    return %arg0, %c0_i32, %c0_i32_0, %c0_i32_1 : i32, i32, i32, i32
  }
}

</mosaic_0001>

<llo_original>
// kernel: tpu_custom_call.1
$region0: #{tpu_custom_call.1}
  #allocation0 [shape = 'u32[]', space=smem, size = 0x4, offset = 0x4, fixed_abs, tag = 'smem constant byte address 0x4 - core index']
  #allocation1 [shape = 'u32[144,128]{1,0:T(1,128)}', space=vmem, size = 0x12000, scoped, tag = 'internal scratch']
  %s0 = inlined_call_operand.hbm [shape: f32[16,32], index: 0, kind: input, shape index: {}]
  %s1 = inlined_call_operand.hbm [shape: f32[32,32], index: 1, kind: input, shape index: {}]
  %s2 = inlined_call_operand.hbm [shape: f32[32,32], index: 2, kind: input, shape index: {}]
  %s3 = inlined_call_operand.hbm [shape: f32[32,32], index: 3, kind: input, shape index: {}]
  %s4 = inlined_call_operand.vmem [shape: f32[1,32], index: 4, kind: input, shape index: {}]
  %s5 = inlined_call_operand.vmem [shape: f32[1,32], index: 5, kind: input, shape index: {}]
  %s6 = inlined_call_operand.vmem [shape: f32[1,32], index: 6, kind: input, shape index: {}]
  %s7 = inlined_call_operand.hbm [shape: f32[32,32], index: 7, kind: input, shape index: {}]
  %s8 = inlined_call_operand.vmem [shape: f32[1,32], index: 8, kind: input, shape index: {}]
  %s9 = inlined_call_operand.hbm [shape: f32[16,32], index: 9, kind: output, shape index: {0}]
  %s10 = inlined_call_operand.hbm [shape: f32[2,4,8,8], index: 10, kind: output, shape index: {1}]
  %11 = xla_tuple %s9, %s10
  %s12 = sld [smem:[#allocation0]]
  $region74: #{tpu_custom_call.1} parent=0
    _
  %s14 = ssub.s32 1, %s12
  %s15 = scalar_select 0, %s14, %s12
  $region1: #{tpu_custom_call.1} parent=0
    #allocation2 [shape = 'u8[8192]{0}', space=vmem, size = 0x2000, scoped, tag = 'input window, operand 0, single buffered']
    #allocation3 [shape = 's32[1]{0}', space=sflag, size = 0x4, scoped, tag = 'scoped memory for tpu_custom_call.1']
    #allocation4 [shape = 's32[1]{0}', space=sflag, size = 0x4, scoped, tag = 'scoped memory for tpu_custom_call.1']
    #allocation5 [shape = 'u8[16384]{0}', space=vmem, size = 0x4000, scoped, tag = 'input window, operand 1, single buffered']
    #allocation6 [shape = 's32[1]{0}', space=sflag, size = 0x4, scoped, tag = 'scoped memory for tpu_custom_call.1']
    #allocation7 [shape = 'u8[16384]{0}', space=vmem, size = 0x4000, scoped, tag = 'input window, operand 2, single buffered']
    #allocation8 [shape = 'u8[16384]{0}', space=vmem, size = 0x4000, scoped, tag = 'input window, operand 3, single buffered']
    #allocation9 [shape = 's32[1]{0}', space=sflag, size = 0x4, scoped, tag = 'scoped memory for tpu_custom_call.1']
    #allocation10 [shape = 'u8[16384]{0}', space=vmem, size = 0x4000, scoped, tag = 'input window, operand 7, single buffered']
    #allocation11 [shape = 'u8[8192]{0}', space=vmem, size = 0x2000, scoped, tag = 'output window, operand 0, single buffered']
    #allocation12 [shape = 'u8[32768]{0}', space=vmem, size = 0x8000, scoped, tag = 'output window, operand 1, single buffered']
    #allocation13 [shape = 's32[1]{0}', space=sflag, size = 0x4, scoped, tag = 'scoped memory for tpu_custom_call.1']
    %16 = vsyncpa [#allocation3], 0
    %17 = vsyncpa [#allocation6], 0
    %18 = vsyncpa [#allocation9], 0
    %19 = vsyncpa [#allocation4], 0
    %20 = vsyncpa [#allocation13], 0
    // Predicated region
    $region2: #{tpu_custom_call.1} parent=1 // pred_check
      _
    $region3: #{tpu_custom_call.1} parent=1 // pred_check_branch
      %22 = sbr.rel (0) target = $region5
    $region4: #{tpu_custom_call.1} parent=1 // pred_region
      %s24 = ssub.s32 256, 256
      %25 = vsyncadd [#allocation3], %s24
      %s26 = sshll.u32 [#allocation2], 4
      %s27 = int_to_ptr.vmem [resolvable:$true] %s26
      %32 = dma.hbm_to_vmem [thread:$0]  %s0, 256, %s27, [#allocation3], 128, 128, 8
    $region5: #{tpu_custom_call.1} parent=1 // pred_fallthru
      _
    // Predicated region
    $region6: #{tpu_custom_call.1} parent=1 // pred_check
      _
    $region7: #{tpu_custom_call.1} parent=1 // pred_check_branch
      %34 = sbr.rel (0) target = $region9
    $region8: #{tpu_custom_call.1} parent=1 // pred_region
      %s36 = ssub.s32 512, 512
      %37 = vsyncadd [#allocation6], %s36
      %s38 = sshll.u32 [#allocation5], 4
      %s39 = int_to_ptr.vmem [resolvable:$true] %s38
      %44 = dma.hbm_to_vmem [thread:$0]  %s1, 512, %s39, [#allocation6], 128, 128, 8
    $region9: #{tpu_custom_call.1} parent=1 // pred_fallthru
      _
    // Predicated region
    $region10: #{tpu_custom_call.1} parent=1 // pred_check
      _
    $region11: #{tpu_custom_call.1} parent=1 // pred_check_branch
      %46 = sbr.rel (0) target = $region13
    $region12: #{tpu_custom_call.1} parent=1 // pred_region
      %s48 = ssub.s32 512, 512
      %49 = vsyncadd [#allocation6], %s48
      %s50 = sshll.u32 [#allocation7], 4
      %s51 = int_to_ptr.vmem [resolvable:$true] %s50
      %56 = dma.hbm_to_vmem [thread:$0]  %s2, 512, %s51, [#allocation6], 128, 128, 8
    $region13: #{tpu_custom_call.1} parent=1 // pred_fallthru
      _
    // Predicated region
    $region14: #{tpu_custom_call.1} parent=1 // pred_check
      _
    $region15: #{tpu_custom_call.1} parent=1 // pred_check_branch
      %58 = sbr.rel (0) target = $region17
    $region16: #{tpu_custom_call.1} parent=1 // pred_region
      %s60 = ssub.s32 512, 512
      %61 = vsyncadd [#allocation9], %s60
      %s62 = sshll.u32 [#allocation8], 4
      %s63 = int_to_ptr.vmem [resolvable:$true] %s62
      %68 = dma.hbm_to_vmem [thread:$0]  %s3, 512, %s63, [#allocation9], 128, 128, 8
    $region17: #{tpu_custom_call.1} parent=1 // pred_fallthru
      _
    // Predicated region
    $region18: #{tpu_custom_call.1} parent=1 // pred_check
      _
    $region19: #{tpu_custom_call.1} parent=1 // pred_check_branch
      %70 = sbr.rel (0) target = $region21
    $region20: #{tpu_custom_call.1} parent=1 // pred_region
      _
    $region21: #{tpu_custom_call.1} parent=1 // pred_fallthru
      _
    // Predicated region
    $region22: #{tpu_custom_call.1} parent=1 // pred_check
      _
    $region23: #{tpu_custom_call.1} parent=1 // pred_check_branch
      %72 = sbr.rel (0) target = $region25
    $region24: #{tpu_custom_call.1} parent=1 // pred_region
      _
    $region25: #{tpu_custom_call.1} parent=1 // pred_fallthru
      _
    // Predicated region
    $region26: #{tpu_custom_call.1} parent=1 // pred_check
      _
    $region27: #{tpu_custom_call.1} parent=1 // pred_check_branch
      %74 = sbr.rel (0) target = $region29
    $region28: #{tpu_custom_call.1} parent=1 // pred_region
      _
    $region29: #{tpu_custom_call.1} parent=1 // pred_fallthru
      _
    // Predicated region
    $region30: #{tpu_custom_call.1} parent=1 // pred_check
      _
    $region31: #{tpu_custom_call.1} parent=1 // pred_check_branch
      %76 = sbr.rel (0) target = $region33
    $region32: #{tpu_custom_call.1} parent=1 // pred_region
      %s78 = ssub.s32 512, 512
      %79 = vsyncadd [#allocation9], %s78
      %s80 = sshll.u32 [#allocation10], 4
      %s81 = int_to_ptr.vmem [resolvable:$true] %s80
      %86 = dma.hbm_to_vmem [thread:$0]  %s7, 512, %s81, [#allocation9], 128, 128, 8
    $region33: #{tpu_custom_call.1} parent=1 // pred_fallthru
      _
    // Predicated region
    $region34: #{tpu_custom_call.1} parent=1 // pred_check
      _
    $region35: #{tpu_custom_call.1} parent=1 // pred_check_branch
      %88 = sbr.rel (0) target = $region37
    $region36: #{tpu_custom_call.1} parent=1 // pred_region
      _
    $region37: #{tpu_custom_call.1} parent=1 // pred_fallthru
      _
    // Predicated region
    $region38: #{tpu_custom_call.1} parent=1 // pred_check
      _
    $region39: #{tpu_custom_call.1} parent=1 // pred_check_branch
      %90 = sbr.rel (0) target = $region41
    $region40: #{tpu_custom_call.1} parent=1 // pred_region
      %91 = dma.done [#allocation3], 256
    $region41: #{tpu_custom_call.1} parent=1 // pred_fallthru
      _
    // Predicated region
    $region42: #{tpu_custom_call.1} parent=1 // pred_check
      _
    $region43: #{tpu_custom_call.1} parent=1 // pred_check_branch
      %93 = sbr.rel (0) target = $region45
    $region44: #{tpu_custom_call.1} parent=1 // pred_region
      %94 = dma.done [#allocation6], 512
    $region45: #{tpu_custom_call.1} parent=1 // pred_fallthru
      _
    // Predicated region
    $region46: #{tpu_custom_call.1} parent=1 // pred_check
      _
    $region47: #{tpu_custom_call.1} parent=1 // pred_check_branch
      %96 = sbr.rel (0) target = $region49
    $region48: #{tpu_custom_call.1} parent=1 // pred_region
      %97 = dma.done [#allocation6], 512
    $region49: #{tpu_custom_call.1} parent=1 // pred_fallthru
      _
    // Predicated region
    $region50: #{tpu_custom_call.1} parent=1 // pred_check
      _
    $region51: #{tpu_custom_call.1} parent=1 // pred_check_branch
      %99 = sbr.rel (0) target = $region53
    $region52: #{tpu_custom_call.1} parent=1 // pred_region
      %100 = dma.done [#allocation9], 512
    $region53: #{tpu_custom_call.1} parent=1 // pred_fallthru
      _
    // Predicated region
    $region54: #{tpu_custom_call.1} parent=1 // pred_check
      _
    $region55: #{tpu_custom_call.1} parent=1 // pred_check_branch
      %102 = sbr.rel (0) target = $region57
    $region56: #{tpu_custom_call.1} parent=1 // pred_region
      %103 = dma.done [#allocation9], 512
    $region57: #{tpu_custom_call.1} parent=1 // pred_fallthru
      _
    %v104 = vld [vmem:[#allocation2] sm:$0xff]
    %v105 = vld [vmem:[#allocation2 + $0x8] sm:$0xff]
    %v106 = vld [vmem:[#allocation5] sm:$0xff]
    %v107 = vld [vmem:[#allocation5 + $0x8] sm:$0xff]
    %v108 = vld [vmem:[#allocation5 + $0x10] sm:$0xff]
    %v109 = vld [vmem:[#allocation5 + $0x18] sm:$0xff]
    %v110 = vld [vmem:[%s4] sm:$0x1]
    %v112 = vlaneseq
    %v113 = vshrl.u32 %v112, 7
    %v114 = vsub.s32 0, %v113
    %v115 = vrot.slane %v110, %v114
    %vm117 = vcmask 261120
    %v119 = vsel %vm117, %v104, 0
    %v122 = vsel %vm117, %v105, 0
    %124 = vmatprep.subr.mxu0 0.0
    %125 = vmatpush1.msra.mxu0 %v106
    %126 = vmatprep.subr.mxu0 0.0
    %127 = vmatpush1.msra.mxu0 %v107
    %128 = vmatprep.subr.mxu0 0.0
    %129 = vmatpush1.msra.mxu0 %v108
    %130 = vmatprep.subr.mxu0 0.0
    %131 = vmatpush1.msra.mxu0 %v109
    %132 = vmatprep.subr.mxu0 0.0
    %133 = vmatpush1.msra.mxu0 0.0
    %134 = vmatprep.subr.mxu0 0.0
    %135 = vmatpush1.msra.mxu0 0.0
    %136 = vmatprep.subr.mxu0 0.0
    %137 = vmatpush1.msra.mxu0 0.0
    %138 = vmatprep.subr.mxu0 0.0
    %139 = vmatpush1.msra.mxu0 0.0
    %140 = vmatprep.subr.mxu0 0.0
    %141 = vmatpush1.msra.mxu0 0.0
    %142 = vmatprep.subr.mxu0 0.0
    %143 = vmatpush1.msra.mxu0 0.0
    %144 = vmatprep.subr.mxu0 0.0
    %145 = vmatpush1.msra.mxu0 0.0
    %146 = vmatprep.subr.mxu0 0.0
    %147 = vmatpush1.msra.mxu0 0.0
    %148 = vmatprep.subr.mxu0 0.0
    %149 = vmatpush1.msra.mxu0 0.0
    %150 = vmatprep.subr.mxu0 0.0
    %151 = vmatpush1.msra.mxu0 0.0
    %152 = vmatprep.subr.mxu0 0.0
    %153 = vmatpush1.msra.mxu0 0.0
    %154 = vmatprep.subr.mxu0 0.0
    %155 = vmatpush1.msra.mxu0 0.0
    %156 = vmatprep.subr.mxu0 0.0
    %157 = vmatpush1.msra.mxu0 0.0
    %158 = vmatprep.subr.mxu0 0.0
    %159 = vmatpush1.msra.mxu0 0.0
    %160 = vmatprep.subr.mxu0 0.0
    %161 = vmatpush1.msra.mxu0 0.0
    %162 = vmatprep.subr.mxu0 0.0
    %163 = vmatpush1.msra.mxu0 0.0
    %164 = vmatprep.subr.mxu0 0.0
    %165 = vmatpush1.msra.mxu0 0.0
    %166 = vmatprep.subr.mxu0 0.0
    %167 = vmatpush1.msra.mxu0 0.0
    %168 = vmatprep.subr.mxu0 0.0
    %169 = vmatpush1.msra.mxu0 0.0
    %170 = vmatprep.subr.mxu0 0.0
    %171 = vmatpush1.msra.mxu0 0.0
    %172 = vmatprep.subr.mxu0 0.0
    %173 = vmatpush1.msra.mxu0 0.0
    %174 = vmatprep.subr.mxu0 0.0
    %175 = vmatpush1.msra.mxu0 0.0
    %176 = vmatprep.subr.mxu0 0.0
    %177 = vmatpush1.msra.mxu0 0.0
    %178 = vmatprep.subr.mxu0 0.0
    %179 = vmatpush1.msra.mxu0 0.0
    %180 = vmatprep.subr.mxu0 0.0
    %181 = vmatpush1.msra.mxu0 0.0
    %182 = vmatprep.subr.mxu0 0.0
    %183 = vmatpush1.msra.mxu0 0.0
    %184 = vmatprep.subr.mxu0 0.0
    %185 = vmatpush1.msra.mxu0 0.0
    %186 = vmatprep.subr.mxu0 0.0
    %187 = vmatpush1.msra.mxu0 0.0
    %188 = vmatprep.mubr.f32.mxu0 0.0
    %189 = vmatmul.mubr.f32.gmra.mrb[0].mxu0 %v119
    %v190 = vpop.f32.mrb[0].mxu0
    %v191 = vadd.f32 %v115, %v190
    %v192 = vpop.f32.mrb[0].mxu0
    %193 = vmatprep.mubr.f32.mxu0 0.0
    %194 = vmatmul.mubr.f32.gmra.mrb[0].mxu0 %v122
    %v195 = vpop.f32.mrb[0].mxu0
    %v196 = vadd.f32 %v115, %v195
    %v197 = vpop.f32.mrb[0].mxu0
    %198 = vdwg.mxu0
    %v199 = vld [vmem:[#allocation7] sm:$0xff]
    %v200 = vld [vmem:[#allocation7 + $0x8] sm:$0xff]
    %v201 = vld [vmem:[#allocation7 + $0x10] sm:$0xff]
    %v202 = vld [vmem:[#allocation7 + $0x18] sm:$0xff]
    %v203 = vld [vmem:[%s5] sm:$0x1]
    %v205 = vlaneseq
    %v206 = vshrl.u32 %v205, 7
    %v207 = vsub.s32 0, %v206
    %v208 = vrot.slane %v203, %v207
    %210 = vmatprep.subr.mxu0 0.0
    %211 = vmatpush1.msra.mxu0 %v199
    %212 = vmatprep.subr.mxu0 0.0
    %213 = vmatpush1.msra.mxu0 %v200
    %214 = vmatprep.subr.mxu0 0.0
    %215 = vmatpush1.msra.mxu0 %v201
    %216 = vmatprep.subr.mxu0 0.0
    %217 = vmatpush1.msra.mxu0 %v202
    %218 = vmatprep.subr.mxu0 0.0
    %219 = vmatpush1.msra.mxu0 0.0
    %220 = vmatprep.subr.mxu0 0.0
    %221 = vmatpush1.msra.mxu0 0.0
    %222 = vmatprep.subr.mxu0 0.0
    %223 = vmatpush1.msra.mxu0 0.0
    %224 = vmatprep.subr.mxu0 0.0
    %225 = vmatpush1.msra.mxu0 0.0
    %226 = vmatprep.subr.mxu0 0.0
    %227 = vmatpush1.msra.mxu0 0.0
    %228 = vmatprep.subr.mxu0 0.0
    %229 = vmatpush1.msra.mxu0 0.0
    %230 = vmatprep.subr.mxu0 0.0
    %231 = vmatpush1.msra.mxu0 0.0
    %232 = vmatprep.subr.mxu0 0.0
    %233 = vmatpush1.msra.mxu0 0.0
    %234 = vmatprep.subr.mxu0 0.0
    %235 = vmatpush1.msra.mxu0 0.0
    %236 = vmatprep.subr.mxu0 0.0
    %237 = vmatpush1.msra.mxu0 0.0
    %238 = vmatprep.subr.mxu0 0.0
    %239 = vmatpush1.msra.mxu0 0.0
    %240 = vmatprep.subr.mxu0 0.0
    %241 = vmatpush1.msra.mxu0 0.0
    %242 = vmatprep.subr.mxu0 0.0
    %243 = vmatpush1.msra.mxu0 0.0
    %244 = vmatprep.subr.mxu0 0.0
    %245 = vmatpush1.msra.mxu0 0.0
    %246 = vmatprep.subr.mxu0 0.0
    %247 = vmatpush1.msra.mxu0 0.0
    %248 = vmatprep.subr.mxu0 0.0
    %249 = vmatpush1.msra.mxu0 0.0
    %250 = vmatprep.subr.mxu0 0.0
    %251 = vmatpush1.msra.mxu0 0.0
    %252 = vmatprep.subr.mxu0 0.0
    %253 = vmatpush1.msra.mxu0 0.0
    %254 = vmatprep.subr.mxu0 0.0
    %255 = vmatpush1.msra.mxu0 0.0
    %256 = vmatprep.subr.mxu0 0.0
    %257 = vmatpush1.msra.mxu0 0.0
    %258 = vmatprep.subr.mxu0 0.0
    %259 = vmatpush1.msra.mxu0 0.0
    %260 = vmatprep.subr.mxu0 0.0
    %261 = vmatpush1.msra.mxu0 0.0
    %262 = vmatprep.subr.mxu0 0.0
    %263 = vmatpush1.msra.mxu0 0.0
    %264 = vmatprep.subr.mxu0 0.0
    %265 = vmatpush1.msra.mxu0 0.0
    %266 = vmatprep.subr.mxu0 0.0
    %267 = vmatpush1.msra.mxu0 0.0
    %268 = vmatprep.subr.mxu0 0.0
    %269 = vmatpush1.msra.mxu0 0.0
    %270 = vmatprep.subr.mxu0 0.0
    %271 = vmatpush1.msra.mxu0 0.0
    %272 = vmatprep.subr.mxu0 0.0
    %273 = vmatpush1.msra.mxu0 0.0
    %274 = vmatprep.mubr.f32.mxu0 0.0
    %275 = vmatmul.mubr.f32.gmra.mrb[0].mxu0 %v119
    %v276 = vpop.f32.mrb[0].mxu0
    %v277 = vadd.f32 %v208, %v276
    %v278 = vpop.f32.mrb[0].mxu0
    %279 = vmatprep.mubr.f32.mxu0 0.0
    %280 = vmatmul.mubr.f32.gmra.mrb[0].mxu0 %v122
    %v281 = vpop.f32.mrb[0].mxu0
    %v282 = vadd.f32 %v208, %v281
    %v283 = vpop.f32.mrb[0].mxu0
    %284 = vdwg.mxu0
    %v285 = vld [vmem:[#allocation8] sm:$0xff]
    %v286 = vld [vmem:[#allocation8 + $0x8] sm:$0xff]
    %v287 = vld [vmem:[#allocation8 + $0x10] sm:$0xff]
    %v288 = vld [vmem:[#allocation8 + $0x18] sm:$0xff]
    %v289 = vld [vmem:[%s6] sm:$0x1]
    %v291 = vlaneseq
    %v292 = vshrl.u32 %v291, 7
    %v293 = vsub.s32 0, %v292
    %v294 = vrot.slane %v289, %v293
    %296 = vmatprep.subr.mxu0 0.0
    %297 = vmatpush1.msra.mxu0 %v285
    %298 = vmatprep.subr.mxu0 0.0
    %299 = vmatpush1.msra.mxu0 %v286
    %300 = vmatprep.subr.mxu0 0.0
    %301 = vmatpush1.msra.mxu0 %v287
    %302 = vmatprep.subr.mxu0 0.0
    %303 = vmatpush1.msra.mxu0 %v288
    %304 = vmatprep.subr.mxu0 0.0
    %305 = vmatpush1.msra.mxu0 0.0
    %306 = vmatprep.subr.mxu0 0.0
    %307 = vmatpush1.msra.mxu0 0.0
    %308 = vmatprep.subr.mxu0 0.0
    %309 = vmatpush1.msra.mxu0 0.0
    %310 = vmatprep.subr.mxu0 0.0
    %311 = vmatpush1.msra.mxu0 0.0
    %312 = vmatprep.subr.mxu0 0.0
    %313 = vmatpush1.msra.mxu0 0.0
    %314 = vmatprep.subr.mxu0 0.0
    %315 = vmatpush1.msra.mxu0 0.0
    %316 = vmatprep.subr.mxu0 0.0
    %317 = vmatpush1.msra.mxu0 0.0
    %318 = vmatprep.subr.mxu0 0.0
    %319 = vmatpush1.msra.mxu0 0.0
    %320 = vmatprep.subr.mxu0 0.0
    %321 = vmatpush1.msra.mxu0 0.0
    %322 = vmatprep.subr.mxu0 0.0
    %323 = vmatpush1.msra.mxu0 0.0
    %324 = vmatprep.subr.mxu0 0.0
    %325 = vmatpush1.msra.mxu0 0.0
    %326 = vmatprep.subr.mxu0 0.0
    %327 = vmatpush1.msra.mxu0 0.0
    %328 = vmatprep.subr.mxu0 0.0
    %329 = vmatpush1.msra.mxu0 0.0
    %330 = vmatprep.subr.mxu0 0.0
    %331 = vmatpush1.msra.mxu0 0.0
    %332 = vmatprep.subr.mxu0 0.0
    %333 = vmatpush1.msra.mxu0 0.0
    %334 = vmatprep.subr.mxu0 0.0
    %335 = vmatpush1.msra.mxu0 0.0
    %336 = vmatprep.subr.mxu0 0.0
    %337 = vmatpush1.msra.mxu0 0.0
    %338 = vmatprep.subr.mxu0 0.0
    %339 = vmatpush1.msra.mxu0 0.0
    %340 = vmatprep.subr.mxu0 0.0
    %341 = vmatpush1.msra.mxu0 0.0
    %342 = vmatprep.subr.mxu0 0.0
    %343 = vmatpush1.msra.mxu0 0.0
    %344 = vmatprep.subr.mxu0 0.0
    %345 = vmatpush1.msra.mxu0 0.0
    %346 = vmatprep.subr.mxu0 0.0
    %347 = vmatpush1.msra.mxu0 0.0
    %348 = vmatprep.subr.mxu0 0.0
    %349 = vmatpush1.msra.mxu0 0.0
    %350 = vmatprep.subr.mxu0 0.0
    %351 = vmatpush1.msra.mxu0 0.0
    %352 = vmatprep.subr.mxu0 0.0
    %353 = vmatpush1.msra.mxu0 0.0
    %354 = vmatprep.subr.mxu0 0.0
    %355 = vmatpush1.msra.mxu0 0.0
    %356 = vmatprep.subr.mxu0 0.0
    %357 = vmatpush1.msra.mxu0 0.0
    %358 = vmatprep.subr.mxu0 0.0
    %359 = vmatpush1.msra.mxu0 0.0
    %360 = vmatprep.mubr.f32.mxu0 0.0
    %361 = vmatmul.mubr.f32.gmra.mrb[0].mxu0 %v119
    %v362 = vpop.f32.mrb[0].mxu0
    %v363 = vadd.f32 %v294, %v362
    %v364 = vpop.f32.mrb[0].mxu0
    %365 = vmatprep.mubr.f32.mxu0 0.0
    %366 = vmatmul.mubr.f32.gmra.mrb[0].mxu0 %v122
    %v367 = vpop.f32.mrb[0].mxu0
    %v368 = vadd.f32 %v294, %v367
    %v369 = vpop.f32.mrb[0].mxu0
    %370 = vdwg.mxu0
    %372 = vrot.lane.b32.xlu0 %v191, 120
    %v373 = vpop.permute.xlu0 %372
    %374 = vrot.lane.b32.xlu0 %v191, 112
    %v375 = vpop.permute.xlu0 %374
    %376 = vrot.lane.b32.xlu0 %v191, 104
    %v377 = vpop.permute.xlu0 %376
    %379 = vrot.lane.b32.xlu0 %v277, 120
    %v380 = vpop.permute.xlu0 %379
    %381 = vrot.lane.b32.xlu0 %v277, 112
    %v382 = vpop.permute.xlu0 %381
    %383 = vrot.lane.b32.xlu0 %v277, 104
    %v384 = vpop.permute.xlu0 %383
    %386 = vrot.lane.b32.xlu0 %v363, 120
    %v387 = vpop.permute.xlu0 %386
    %389 = vrot.lane.b32.xlu0 %v363, 112
    %v390 = vpop.permute.xlu0 %389
    %392 = vrot.lane.b32.xlu0 %v363, 104
    %v393 = vpop.permute.xlu0 %392
    %vm395 = vcmask 64512
    %v396 = vsel %vm395, %v191, 0
    %v398 = vsel %vm395, %v277, 0
    %400 = vmatprep.subr.mxu0 0.0
    %401 = vmatpush1.xpose.msra.mxu0 %v398
    %402 = vmatprep.subr.mxu0 0.0
    %403 = vmatpush1.xpose.msra.mxu0 0.0
    %404 = vmatprep.subr.mxu0 0.0
    %405 = vmatpush1.xpose.msra.mxu0 0.0
    %406 = vmatprep.subr.mxu0 0.0
    %407 = vmatpush1.xpose.msra.mxu0 0.0
    %408 = vmatprep.subr.mxu0 0.0
    %409 = vmatpush1.xpose.msra.mxu0 0.0
    %410 = vmatprep.subr.mxu0 0.0
    %411 = vmatpush1.xpose.msra.mxu0 0.0
    %412 = vmatprep.subr.mxu0 0.0
    %413 = vmatpush1.xpose.msra.mxu0 0.0
    %414 = vmatprep.subr.mxu0 0.0
    %415 = vmatpush1.xpose.msra.mxu0 0.0
    %416 = vmatprep.subr.mxu0 0.0
    %417 = vmatpush1.xpose.msra.mxu0 0.0
    %418 = vmatprep.subr.mxu0 0.0
    %419 = vmatpush1.xpose.msra.mxu0 0.0
    %420 = vmatprep.subr.mxu0 0.0
    %421 = vmatpush1.xpose.msra.mxu0 0.0
    %422 = vmatprep.subr.mxu0 0.0
    %423 = vmatpush1.xpose.msra.mxu0 0.0
    %424 = vmatprep.subr.mxu0 0.0
    %425 = vmatpush1.xpose.msra.mxu0 0.0
    %426 = vmatprep.subr.mxu0 0.0
    %427 = vmatpush1.xpose.msra.mxu0 0.0
    %428 = vmatprep.subr.mxu0 0.0
    %429 = vmatpush1.xpose.msra.mxu0 0.0
    %430 = vmatprep.subr.mxu0 0.0
    %431 = vmatpush1.xpose.msra.mxu0 0.0
    %432 = vmatprep.subr.mxu0 0.0
    %433 = vmatpush1.xpose.msra.mxu0 0.0
    %434 = vmatprep.subr.mxu0 0.0
    %435 = vmatpush1.xpose.msra.mxu0 0.0
    %436 = vmatprep.subr.mxu0 0.0
    %437 = vmatpush1.xpose.msra.mxu0 0.0
    %438 = vmatprep.subr.mxu0 0.0
    %439 = vmatpush1.xpose.msra.mxu0 0.0
    %440 = vmatprep.subr.mxu0 0.0
    %441 = vmatpush1.xpose.msra.mxu0 0.0
    %442 = vmatprep.subr.mxu0 0.0
    %443 = vmatpush1.xpose.msra.mxu0 0.0
    %444 = vmatprep.subr.mxu0 0.0
    %445 = vmatpush1.xpose.msra.mxu0 0.0
    %446 = vmatprep.subr.mxu0 0.0
    %447 = vmatpush1.xpose.msra.mxu0 0.0
    %448 = vmatprep.subr.mxu0 0.0
    %449 = vmatpush1.xpose.msra.mxu0 0.0
    %450 = vmatprep.subr.mxu0 0.0
    %451 = vmatpush1.xpose.msra.mxu0 0.0
    %452 = vmatprep.subr.mxu0 0.0
    %453 = vmatpush1.xpose.msra.mxu0 0.0
    %454 = vmatprep.subr.mxu0 0.0
    %455 = vmatpush1.xpose.msra.mxu0 0.0
    %456 = vmatprep.subr.mxu0 0.0
    %457 = vmatpush1.xpose.msra.mxu0 0.0
    %458 = vmatprep.subr.mxu0 0.0
    %459 = vmatpush1.xpose.msra.mxu0 0.0
    %460 = vmatprep.subr.mxu0 0.0
    %461 = vmatpush1.xpose.msra.mxu0 0.0
    %462 = vmatprep.subr.mxu0 0.0
    %463 = vmatpush1.xpose.msra.mxu0 0.0
    %464 = vmatprep.mubr.f32.mxu0 0.0
    %465 = vmatmul.mubr.f32.gmra.mrb[0].mxu0 %v396
    %v466 = vpop.f32.mrb[0].mxu0
    %v467 = vadd.f32 0.0, %v466
    %v468 = vpop.f32.mrb[0].mxu0
    %469 = vdwg.mxu0
    %v470 = vsel %vm395, %v373, 0
    %v472 = vsel %vm395, %v380, 0
    %474 = vmatprep.subr.mxu0 0.0
    %475 = vmatpush1.xpose.msra.mxu0 %v472
    %476 = vmatprep.subr.mxu0 0.0
    %477 = vmatpush1.xpose.msra.mxu0 0.0
    %478 = vmatprep.subr.mxu0 0.0
    %479 = vmatpush1.xpose.msra.mxu0 0.0
    %480 = vmatprep.subr.mxu0 0.0
    %481 = vmatpush1.xpose.msra.mxu0 0.0
    %482 = vmatprep.subr.mxu0 0.0
    %483 = vmatpush1.xpose.msra.mxu0 0.0
    %484 = vmatprep.subr.mxu0 0.0
    %485 = vmatpush1.xpose.msra.mxu0 0.0
    %486 = vmatprep.subr.mxu0 0.0
    %487 = vmatpush1.xpose.msra.mxu0 0.0
    %488 = vmatprep.subr.mxu0 0.0
    %489 = vmatpush1.xpose.msra.mxu0 0.0
    %490 = vmatprep.subr.mxu0 0.0
    %491 = vmatpush1.xpose.msra.mxu0 0.0
    %492 = vmatprep.subr.mxu0 0.0
    %493 = vmatpush1.xpose.msra.mxu0 0.0
    %494 = vmatprep.subr.mxu0 0.0
    %495 = vmatpush1.xpose.msra.mxu0 0.0
    %496 = vmatprep.subr.mxu0 0.0
    %497 = vmatpush1.xpose.msra.mxu0 0.0
    %498 = vmatprep.subr.mxu0 0.0
    %499 = vmatpush1.xpose.msra.mxu0 0.0
    %500 = vmatprep.subr.mxu0 0.0
    %501 = vmatpush1.xpose.msra.mxu0 0.0
    %502 = vmatprep.subr.mxu0 0.0
    %503 = vmatpush1.xpose.msra.mxu0 0.0
    %504 = vmatprep.subr.mxu0 0.0
    %505 = vmatpush1.xpose.msra.mxu0 0.0
    %506 = vmatprep.subr.mxu0 0.0
    %507 = vmatpush1.xpose.msra.mxu0 0.0
    %508 = vmatprep.subr.mxu0 0.0
    %509 = vmatpush1.xpose.msra.mxu0 0.0
    %510 = vmatprep.subr.mxu0 0.0
    %511 = vmatpush1.xpose.msra.mxu0 0.0
    %512 = vmatprep.subr.mxu0 0.0
    %513 = vmatpush1.xpose.msra.mxu0 0.0
    %514 = vmatprep.subr.mxu0 0.0
    %515 = vmatpush1.xpose.msra.mxu0 0.0
    %516 = vmatprep.subr.mxu0 0.0
    %517 = vmatpush1.xpose.msra.mxu0 0.0
    %518 = vmatprep.subr.mxu0 0.0
    %519 = vmatpush1.xpose.msra.mxu0 0.0
    %520 = vmatprep.subr.mxu0 0.0
    %521 = vmatpush1.xpose.msra.mxu0 0.0
    %522 = vmatprep.subr.mxu0 0.0
    %523 = vmatpush1.xpose.msra.mxu0 0.0
    %524 = vmatprep.subr.mxu0 0.0
    %525 = vmatpush1.xpose.msra.mxu0 0.0
    %526 = vmatprep.subr.mxu0 0.0
    %527 = vmatpush1.xpose.msra.mxu0 0.0
    %528 = vmatprep.subr.mxu0 0.0
    %529 = vmatpush1.xpose.msra.mxu0 0.0
    %530 = vmatprep.subr.mxu0 0.0
    %531 = vmatpush1.xpose.msra.mxu0 0.0
    %532 = vmatprep.subr.mxu0 0.0
    %533 = vmatpush1.xpose.msra.mxu0 0.0
    %534 = vmatprep.subr.mxu0 0.0
    %535 = vmatpush1.xpose.msra.mxu0 0.0
    %536 = vmatprep.subr.mxu0 0.0
    %537 = vmatpush1.xpose.msra.mxu0 0.0
    %538 = vmatprep.mubr.f32.mxu0 0.0
    %539 = vmatmul.mubr.f32.gmra.mrb[0].mxu0 %v470
    %v540 = vpop.f32.mrb[0].mxu0
    %v541 = vadd.f32 0.0, %v540
    %v542 = vpop.f32.mrb[0].mxu0
    %543 = vdwg.mxu0
    %v544 = vsel %vm395, %v375, 0
    %v546 = vsel %vm395, %v382, 0
    %548 = vmatprep.subr.mxu0 0.0
    %549 = vmatpush1.xpose.msra.mxu0 %v546
    %550 = vmatprep.subr.mxu0 0.0
    %551 = vmatpush1.xpose.msra.mxu0 0.0
    %552 = vmatprep.subr.mxu0 0.0
    %553 = vmatpush1.xpose.msra.mxu0 0.0
    %554 = vmatprep.subr.mxu0 0.0
    %555 = vmatpush1.xpose.msra.mxu0 0.0
    %556 = vmatprep.subr.mxu0 0.0
    %557 = vmatpush1.xpose.msra.mxu0 0.0
    %558 = vmatprep.subr.mxu0 0.0
    %559 = vmatpush1.xpose.msra.mxu0 0.0
    %560 = vmatprep.subr.mxu0 0.0
    %561 = vmatpush1.xpose.msra.mxu0 0.0
    %562 = vmatprep.subr.mxu0 0.0
    %563 = vmatpush1.xpose.msra.mxu0 0.0
    %564 = vmatprep.subr.mxu0 0.0
    %565 = vmatpush1.xpose.msra.mxu0 0.0
    %566 = vmatprep.subr.mxu0 0.0
    %567 = vmatpush1.xpose.msra.mxu0 0.0
    %568 = vmatprep.subr.mxu0 0.0
    %569 = vmatpush1.xpose.msra.mxu0 0.0
    %570 = vmatprep.subr.mxu0 0.0
    %571 = vmatpush1.xpose.msra.mxu0 0.0
    %572 = vmatprep.subr.mxu0 0.0
    %573 = vmatpush1.xpose.msra.mxu0 0.0
    %574 = vmatprep.subr.mxu0 0.0
    %575 = vmatpush1.xpose.msra.mxu0 0.0
    %576 = vmatprep.subr.mxu0 0.0
    %577 = vmatpush1.xpose.msra.mxu0 0.0
    %578 = vmatprep.subr.mxu0 0.0
    %579 = vmatpush1.xpose.msra.mxu0 0.0
    %580 = vmatprep.subr.mxu0 0.0
    %581 = vmatpush1.xpose.msra.mxu0 0.0
    %582 = vmatprep.subr.mxu0 0.0
    %583 = vmatpush1.xpose.msra.mxu0 0.0
    %584 = vmatprep.subr.mxu0 0.0
    %585 = vmatpush1.xpose.msra.mxu0 0.0
    %586 = vmatprep.subr.mxu0 0.0
    %587 = vmatpush1.xpose.msra.mxu0 0.0
    %588 = vmatprep.subr.mxu0 0.0
    %589 = vmatpush1.xpose.msra.mxu0 0.0
    %590 = vmatprep.subr.mxu0 0.0
    %591 = vmatpush1.xpose.msra.mxu0 0.0
    %592 = vmatprep.subr.mxu0 0.0
    %593 = vmatpush1.xpose.msra.mxu0 0.0
    %594 = vmatprep.subr.mxu0 0.0
    %595 = vmatpush1.xpose.msra.mxu0 0.0
    %596 = vmatprep.subr.mxu0 0.0
    %597 = vmatpush1.xpose.msra.mxu0 0.0
    %598 = vmatprep.subr.mxu0 0.0
    %599 = vmatpush1.xpose.msra.mxu0 0.0
    %600 = vmatprep.subr.mxu0 0.0
    %601 = vmatpush1.xpose.msra.mxu0 0.0
    %602 = vmatprep.subr.mxu0 0.0
    %603 = vmatpush1.xpose.msra.mxu0 0.0
    %604 = vmatprep.subr.mxu0 0.0
    %605 = vmatpush1.xpose.msra.mxu0 0.0
    %606 = vmatprep.subr.mxu0 0.0
    %607 = vmatpush1.xpose.msra.mxu0 0.0
    %608 = vmatprep.subr.mxu0 0.0
    %609 = vmatpush1.xpose.msra.mxu0 0.0
    %610 = vmatprep.subr.mxu0 0.0
    %611 = vmatpush1.xpose.msra.mxu0 0.0
    %612 = vmatprep.mubr.f32.mxu0 0.0
    %613 = vmatmul.mubr.f32.gmra.mrb[0].mxu0 %v544
    %v614 = vpop.f32.mrb[0].mxu0
    %v615 = vadd.f32 0.0, %v614
    %v616 = vpop.f32.mrb[0].mxu0
    %617 = vdwg.mxu0
    %v618 = vsel %vm395, %v377, 0
    %v620 = vsel %vm395, %v384, 0
    %622 = vmatprep.subr.mxu0 0.0
    %623 = vmatpush1.xpose.msra.mxu0 %v620
    %624 = vmatprep.subr.mxu0 0.0
    %625 = vmatpush1.xpose.msra.mxu0 0.0
    %626 = vmatprep.subr.mxu0 0.0
    %627 = vmatpush1.xpose.msra.mxu0 0.0
    %628 = vmatprep.subr.mxu0 0.0
    %629 = vmatpush1.xpose.msra.mxu0 0.0
    %630 = vmatprep.subr.mxu0 0.0
    %631 = vmatpush1.xpose.msra.mxu0 0.0
    %632 = vmatprep.subr.mxu0 0.0
    %633 = vmatpush1.xpose.msra.mxu0 0.0
    %634 = vmatprep.subr.mxu0 0.0
    %635 = vmatpush1.xpose.msra.mxu0 0.0
    %636 = vmatprep.subr.mxu0 0.0
    %637 = vmatpush1.xpose.msra.mxu0 0.0
    %638 = vmatprep.subr.mxu0 0.0
    %639 = vmatpush1.xpose.msra.mxu0 0.0
    %640 = vmatprep.subr.mxu0 0.0
    %641 = vmatpush1.xpose.msra.mxu0 0.0
    %642 = vmatprep.subr.mxu0 0.0
    %643 = vmatpush1.xpose.msra.mxu0 0.0
    %644 = vmatprep.subr.mxu0 0.0
    %645 = vmatpush1.xpose.msra.mxu0 0.0
    %646 = vmatprep.subr.mxu0 0.0
    %647 = vmatpush1.xpose.msra.mxu0 0.0
    %648 = vmatprep.subr.mxu0 0.0
    %649 = vmatpush1.xpose.msra.mxu0 0.0
    %650 = vmatprep.subr.mxu0 0.0
    %651 = vmatpush1.xpose.msra.mxu0 0.0
    %652 = vmatprep.subr.mxu0 0.0
    %653 = vmatpush1.xpose.msra.mxu0 0.0
    %654 = vmatprep.subr.mxu0 0.0
    %655 = vmatpush1.xpose.msra.mxu0 0.0
    %656 = vmatprep.subr.mxu0 0.0
    %657 = vmatpush1.xpose.msra.mxu0 0.0
    %658 = vmatprep.subr.mxu0 0.0
    %659 = vmatpush1.xpose.msra.mxu0 0.0
    %660 = vmatprep.subr.mxu0 0.0
    %661 = vmatpush1.xpose.msra.mxu0 0.0
    %662 = vmatprep.subr.mxu0 0.0
    %663 = vmatpush1.xpose.msra.mxu0 0.0
    %664 = vmatprep.subr.mxu0 0.0
    %665 = vmatpush1.xpose.msra.mxu0 0.0
    %666 = vmatprep.subr.mxu0 0.0
    %667 = vmatpush1.xpose.msra.mxu0 0.0
    %668 = vmatprep.subr.mxu0 0.0
    %669 = vmatpush1.xpose.msra.mxu0 0.0
    %670 = vmatprep.subr.mxu0 0.0
    %671 = vmatpush1.xpose.msra.mxu0 0.0
    %672 = vmatprep.subr.mxu0 0.0
    %673 = vmatpush1.xpose.msra.mxu0 0.0
    %674 = vmatprep.subr.mxu0 0.0
    %675 = vmatpush1.xpose.msra.mxu0 0.0
    %676 = vmatprep.subr.mxu0 0.0
    %677 = vmatpush1.xpose.msra.mxu0 0.0
    %678 = vmatprep.subr.mxu0 0.0
    %679 = vmatpush1.xpose.msra.mxu0 0.0
    %680 = vmatprep.subr.mxu0 0.0
    %681 = vmatpush1.xpose.msra.mxu0 0.0
    %682 = vmatprep.subr.mxu0 0.0
    %683 = vmatpush1.xpose.msra.mxu0 0.0
    %684 = vmatprep.subr.mxu0 0.0
    %685 = vmatpush1.xpose.msra.mxu0 0.0
    %686 = vmatprep.mubr.f32.mxu0 0.0
    %687 = vmatmul.mubr.f32.gmra.mrb[0].mxu0 %v618
    %v688 = vpop.f32.mrb[0].mxu0
    %v689 = vadd.f32 0.0, %v688
    %v690 = vpop.f32.mrb[0].mxu0
    %691 = vdwg.mxu0
    %v692 = vmul.f32 %v467, 0.35355338
    %v693 = vmul.f32 %v541, 0.35355338
    %v694 = vmul.f32 %v615, 0.35355338
    %v695 = vmul.f32 %v689, 0.35355338
    %v696 = vsel %vm395, %v692, -inf
    %697 = vmax.xlane.f32.xlu0 %v696
    %v698 = vpop.xlane.xlu0 %697
    %v699 = vsel %vm395, %v693, -inf
    %700 = vmax.xlane.f32.xlu0 %v699
    %v701 = vpop.xlane.xlu0 %700
    %v702 = vsel %vm395, %v694, -inf
    %703 = vmax.xlane.f32.xlu0 %v702
    %v704 = vpop.xlane.xlu0 %703
    %v705 = vsel %vm395, %v695, -inf
    %706 = vmax.xlane.f32.xlu0 %v705
    %v707 = vpop.xlane.xlu0 %706
    %v708 = vsub.f32 %v692, %v698
    %v709 = vsub.f32 %v693, %v701
    %v710 = vsub.f32 %v694, %v704
    %v711 = vsub.f32 %v695, %v707
    %v712 = vmul.f32 %v708, 1.442695
    %v713 = vpow.pop %v712
    %v714 = vmul.f32 %v709, 1.442695
    %v715 = vpow.pop %v714
    %v716 = vmul.f32 %v710, 1.442695
    %v717 = vpow.pop %v716
    %v718 = vmul.f32 %v711, 1.442695
    %v719 = vpow.pop %v718
    %v720 = vsel %vm395, %v713, 0.0
    %721 = vadd.xlane.f32.xlu0 %v720
    %v722 = vpop.xlane.xlu0 %721
    %v723 = vsel %vm395, %v715, 0.0
    %724 = vadd.xlane.f32.xlu0 %v723
    %v725 = vpop.xlane.xlu0 %724
    %v726 = vsel %vm395, %v717, 0.0
    %727 = vadd.xlane.f32.xlu0 %v726
    %v728 = vpop.xlane.xlu0 %727
    %v729 = vsel %vm395, %v719, 0.0
    %730 = vadd.xlane.f32.xlu0 %v729
    %v731 = vpop.xlane.xlu0 %730
    %v732 = vrcp.pop %v722
    %v733 = vrcp.pop %v725
    %v734 = vrcp.pop %v728
    %v735 = vrcp.pop %v731
    %v736 = vmul.f32 %v713, %v732
    %v737 = vmul.f32 %v715, %v733
    %v738 = vmul.f32 %v717, %v734
    %v739 = vmul.f32 %v719, %v735
    %v741 = vsel %vm395, %v736, 0
    %743 = vmatprep.subr.mxu0 0.0
    %744 = vmatpush1.msra.mxu0 %v363
    %745 = vmatprep.subr.mxu0 0.0
    %746 = vmatpush1.msra.mxu0 0.0
    %747 = vmatprep.subr.mxu0 0.0
    %748 = vmatpush1.msra.mxu0 0.0
    %749 = vmatprep.subr.mxu0 0.0
    %750 = vmatpush1.msra.mxu0 0.0
    %751 = vmatprep.subr.mxu0 0.0
    %752 = vmatpush1.msra.mxu0 0.0
    %753 = vmatprep.subr.mxu0 0.0
    %754 = vmatpush1.msra.mxu0 0.0
    %755 = vmatprep.subr.mxu0 0.0
    %756 = vmatpush1.msra.mxu0 0.0
    %757 = vmatprep.subr.mxu0 0.0
    %758 = vmatpush1.msra.mxu0 0.0
    %759 = vmatprep.subr.mxu0 0.0
    %760 = vmatpush1.msra.mxu0 0.0
    %761 = vmatprep.subr.mxu0 0.0
    %762 = vmatpush1.msra.mxu0 0.0
    %763 = vmatprep.subr.mxu0 0.0
    %764 = vmatpush1.msra.mxu0 0.0
    %765 = vmatprep.subr.mxu0 0.0
    %766 = vmatpush1.msra.mxu0 0.0
    %767 = vmatprep.subr.mxu0 0.0
    %768 = vmatpush1.msra.mxu0 0.0
    %769 = vmatprep.subr.mxu0 0.0
    %770 = vmatpush1.msra.mxu0 0.0
    %771 = vmatprep.subr.mxu0 0.0
    %772 = vmatpush1.msra.mxu0 0.0
    %773 = vmatprep.subr.mxu0 0.0
    %774 = vmatpush1.msra.mxu0 0.0
    %775 = vmatprep.subr.mxu0 0.0
    %776 = vmatpush1.msra.mxu0 0.0
    %777 = vmatprep.subr.mxu0 0.0
    %778 = vmatpush1.msra.mxu0 0.0
    %779 = vmatprep.subr.mxu0 0.0
    %780 = vmatpush1.msra.mxu0 0.0
    %781 = vmatprep.subr.mxu0 0.0
    %782 = vmatpush1.msra.mxu0 0.0
    %783 = vmatprep.subr.mxu0 0.0
    %784 = vmatpush1.msra.mxu0 0.0
    %785 = vmatprep.subr.mxu0 0.0
    %786 = vmatpush1.msra.mxu0 0.0
    %787 = vmatprep.subr.mxu0 0.0
    %788 = vmatpush1.msra.mxu0 0.0
    %789 = vmatprep.subr.mxu0 0.0
    %790 = vmatpush1.msra.mxu0 0.0
    %791 = vmatprep.subr.mxu0 0.0
    %792 = vmatpush1.msra.mxu0 0.0
    %793 = vmatprep.subr.mxu0 0.0
    %794 = vmatpush1.msra.mxu0 0.0
    %795 = vmatprep.subr.mxu0 0.0
    %796 = vmatpush1.msra.mxu0 0.0
    %797 = vmatprep.subr.mxu0 0.0
    %798 = vmatpush1.msra.mxu0 0.0
    %799 = vmatprep.subr.mxu0 0.0
    %800 = vmatpush1.msra.mxu0 0.0
    %801 = vmatprep.subr.mxu0 0.0
    %802 = vmatpush1.msra.mxu0 0.0
    %803 = vmatprep.subr.mxu0 0.0
    %804 = vmatpush1.msra.mxu0 0.0
    %805 = vmatprep.subr.mxu0 0.0
    %806 = vmatpush1.msra.mxu0 0.0
    %807 = vmatprep.mubr.f32.mxu0 0.0
    %808 = vmatmul.mubr.f32.gmra.mrb[0].mxu0 %v741
    %v809 = vpop.f32.mrb[0].mxu0
    %v810 = vadd.f32 0.0, %v809
    %v811 = vpop.f32.mrb[0].mxu0
    %812 = vdwg.mxu0
    %v814 = vsel %vm395, %v737, 0
    %816 = vmatprep.subr.mxu0 0.0
    %817 = vmatpush1.msra.mxu0 %v387
    %818 = vmatprep.subr.mxu0 0.0
    %819 = vmatpush1.msra.mxu0 0.0
    %820 = vmatprep.subr.mxu0 0.0
    %821 = vmatpush1.msra.mxu0 0.0
    %822 = vmatprep.subr.mxu0 0.0
    %823 = vmatpush1.msra.mxu0 0.0
    %824 = vmatprep.subr.mxu0 0.0
    %825 = vmatpush1.msra.mxu0 0.0
    %826 = vmatprep.subr.mxu0 0.0
    %827 = vmatpush1.msra.mxu0 0.0
    %828 = vmatprep.subr.mxu0 0.0
    %829 = vmatpush1.msra.mxu0 0.0
    %830 = vmatprep.subr.mxu0 0.0
    %831 = vmatpush1.msra.mxu0 0.0
    %832 = vmatprep.subr.mxu0 0.0
    %833 = vmatpush1.msra.mxu0 0.0
    %834 = vmatprep.subr.mxu0 0.0
    %835 = vmatpush1.msra.mxu0 0.0
    %836 = vmatprep.subr.mxu0 0.0
    %837 = vmatpush1.msra.mxu0 0.0
    %838 = vmatprep.subr.mxu0 0.0
    %839 = vmatpush1.msra.mxu0 0.0
    %840 = vmatprep.subr.mxu0 0.0
    %841 = vmatpush1.msra.mxu0 0.0
    %842 = vmatprep.subr.mxu0 0.0
    %843 = vmatpush1.msra.mxu0 0.0
    %844 = vmatprep.subr.mxu0 0.0
    %845 = vmatpush1.msra.mxu0 0.0
    %846 = vmatprep.subr.mxu0 0.0
    %847 = vmatpush1.msra.mxu0 0.0
    %848 = vmatprep.subr.mxu0 0.0
    %849 = vmatpush1.msra.mxu0 0.0
    %850 = vmatprep.subr.mxu0 0.0
    %851 = vmatpush1.msra.mxu0 0.0
    %852 = vmatprep.subr.mxu0 0.0
    %853 = vmatpush1.msra.mxu0 0.0
    %854 = vmatprep.subr.mxu0 0.0
    %855 = vmatpush1.msra.mxu0 0.0
    %856 = vmatprep.subr.mxu0 0.0
    %857 = vmatpush1.msra.mxu0 0.0
    %858 = vmatprep.subr.mxu0 0.0
    %859 = vmatpush1.msra.mxu0 0.0
    %860 = vmatprep.subr.mxu0 0.0
    %861 = vmatpush1.msra.mxu0 0.0
    %862 = vmatprep.subr.mxu0 0.0
    %863 = vmatpush1.msra.mxu0 0.0
    %864 = vmatprep.subr.mxu0 0.0
    %865 = vmatpush1.msra.mxu0 0.0
    %866 = vmatprep.subr.mxu0 0.0
    %867 = vmatpush1.msra.mxu0 0.0
    %868 = vmatprep.subr.mxu0 0.0
    %869 = vmatpush1.msra.mxu0 0.0
    %870 = vmatprep.subr.mxu0 0.0
    %871 = vmatpush1.msra.mxu0 0.0
    %872 = vmatprep.subr.mxu0 0.0
    %873 = vmatpush1.msra.mxu0 0.0
    %874 = vmatprep.subr.mxu0 0.0
    %875 = vmatpush1.msra.mxu0 0.0
    %876 = vmatprep.subr.mxu0 0.0
    %877 = vmatpush1.msra.mxu0 0.0
    %878 = vmatprep.subr.mxu0 0.0
    %879 = vmatpush1.msra.mxu0 0.0
    %880 = vmatprep.mubr.f32.mxu0 0.0
    %881 = vmatmul.mubr.f32.gmra.mrb[0].mxu0 %v814
    %v882 = vpop.f32.mrb[0].mxu0
    %v883 = vadd.f32 0.0, %v882
    %v884 = vpop.f32.mrb[0].mxu0
    %885 = vdwg.mxu0
    %v887 = vsel %vm395, %v738, 0
    %889 = vmatprep.subr.mxu0 0.0
    %890 = vmatpush1.msra.mxu0 %v390
    %891 = vmatprep.subr.mxu0 0.0
    %892 = vmatpush1.msra.mxu0 0.0
    %893 = vmatprep.subr.mxu0 0.0
    %894 = vmatpush1.msra.mxu0 0.0
    %895 = vmatprep.subr.mxu0 0.0
    %896 = vmatpush1.msra.mxu0 0.0
    %897 = vmatprep.subr.mxu0 0.0
    %898 = vmatpush1.msra.mxu0 0.0
    %899 = vmatprep.subr.mxu0 0.0
    %900 = vmatpush1.msra.mxu0 0.0
    %901 = vmatprep.subr.mxu0 0.0
    %902 = vmatpush1.msra.mxu0 0.0
    %903 = vmatprep.subr.mxu0 0.0
    %904 = vmatpush1.msra.mxu0 0.0
    %905 = vmatprep.subr.mxu0 0.0
    %906 = vmatpush1.msra.mxu0 0.0
    %907 = vmatprep.subr.mxu0 0.0
    %908 = vmatpush1.msra.mxu0 0.0
    %909 = vmatprep.subr.mxu0 0.0
    %910 = vmatpush1.msra.mxu0 0.0
    %911 = vmatprep.subr.mxu0 0.0
    %912 = vmatpush1.msra.mxu0 0.0
    %913 = vmatprep.subr.mxu0 0.0
    %914 = vmatpush1.msra.mxu0 0.0
    %915 = vmatprep.subr.mxu0 0.0
    %916 = vmatpush1.msra.mxu0 0.0
    %917 = vmatprep.subr.mxu0 0.0
    %918 = vmatpush1.msra.mxu0 0.0
    %919 = vmatprep.subr.mxu0 0.0
    %920 = vmatpush1.msra.mxu0 0.0
    %921 = vmatprep.subr.mxu0 0.0
    %922 = vmatpush1.msra.mxu0 0.0
    %923 = vmatprep.subr.mxu0 0.0
    %924 = vmatpush1.msra.mxu0 0.0
    %925 = vmatprep.subr.mxu0 0.0
    %926 = vmatpush1.msra.mxu0 0.0
    %927 = vmatprep.subr.mxu0 0.0
    %928 = vmatpush1.msra.mxu0 0.0
    %929 = vmatprep.subr.mxu0 0.0
    %930 = vmatpush1.msra.mxu0 0.0
    %931 = vmatprep.subr.mxu0 0.0
    %932 = vmatpush1.msra.mxu0 0.0
    %933 = vmatprep.subr.mxu0 0.0
    %934 = vmatpush1.msra.mxu0 0.0
    %935 = vmatprep.subr.mxu0 0.0
    %936 = vmatpush1.msra.mxu0 0.0
    %937 = vmatprep.subr.mxu0 0.0
    %938 = vmatpush1.msra.mxu0 0.0
    %939 = vmatprep.subr.mxu0 0.0
    %940 = vmatpush1.msra.mxu0 0.0
    %941 = vmatprep.subr.mxu0 0.0
    %942 = vmatpush1.msra.mxu0 0.0
    %943 = vmatprep.subr.mxu0 0.0
    %944 = vmatpush1.msra.mxu0 0.0
    %945 = vmatprep.subr.mxu0 0.0
    %946 = vmatpush1.msra.mxu0 0.0
    %947 = vmatprep.subr.mxu0 0.0
    %948 = vmatpush1.msra.mxu0 0.0
    %949 = vmatprep.subr.mxu0 0.0
    %950 = vmatpush1.msra.mxu0 0.0
    %951 = vmatprep.subr.mxu0 0.0
    %952 = vmatpush1.msra.mxu0 0.0
    %953 = vmatprep.mubr.f32.mxu0 0.0
    %954 = vmatmul.mubr.f32.gmra.mrb[0].mxu0 %v887
    %v955 = vpop.f32.mrb[0].mxu0
    %v956 = vadd.f32 0.0, %v955
    %v957 = vpop.f32.mrb[0].mxu0
    %958 = vdwg.mxu0
    %v960 = vsel %vm395, %v739, 0
    %962 = vmatprep.subr.mxu0 0.0
    %963 = vmatpush1.msra.mxu0 %v393
    %964 = vmatprep.subr.mxu0 0.0
    %965 = vmatpush1.msra.mxu0 0.0
    %966 = vmatprep.subr.mxu0 0.0
    %967 = vmatpush1.msra.mxu0 0.0
    %968 = vmatprep.subr.mxu0 0.0
    %969 = vmatpush1.msra.mxu0 0.0
    %970 = vmatprep.subr.mxu0 0.0
    %971 = vmatpush1.msra.mxu0 0.0
    %972 = vmatprep.subr.mxu0 0.0
    %973 = vmatpush1.msra.mxu0 0.0
    %974 = vmatprep.subr.mxu0 0.0
    %975 = vmatpush1.msra.mxu0 0.0
    %976 = vmatprep.subr.mxu0 0.0
    %977 = vmatpush1.msra.mxu0 0.0
    %978 = vmatprep.subr.mxu0 0.0
    %979 = vmatpush1.msra.mxu0 0.0
    %980 = vmatprep.subr.mxu0 0.0
    %981 = vmatpush1.msra.mxu0 0.0
    %982 = vmatprep.subr.mxu0 0.0
    %983 = vmatpush1.msra.mxu0 0.0
    %984 = vmatprep.subr.mxu0 0.0
    %985 = vmatpush1.msra.mxu0 0.0
    %986 = vmatprep.subr.mxu0 0.0
    %987 = vmatpush1.msra.mxu0 0.0
    %988 = vmatprep.subr.mxu0 0.0
    %989 = vmatpush1.msra.mxu0 0.0
    %990 = vmatprep.subr.mxu0 0.0
    %991 = vmatpush1.msra.mxu0 0.0
    %992 = vmatprep.subr.mxu0 0.0
    %993 = vmatpush1.msra.mxu0 0.0
    %994 = vmatprep.subr.mxu0 0.0
    %995 = vmatpush1.msra.mxu0 0.0
    %996 = vmatprep.subr.mxu0 0.0
    %997 = vmatpush1.msra.mxu0 0.0
    %998 = vmatprep.subr.mxu0 0.0
    %999 = vmatpush1.msra.mxu0 0.0
    %1000 = vmatprep.subr.mxu0 0.0
    %1001 = vmatpush1.msra.mxu0 0.0
    %1002 = vmatprep.subr.mxu0 0.0
    %1003 = vmatpush1.msra.mxu0 0.0
    %1004 = vmatprep.subr.mxu0 0.0
    %1005 = vmatpush1.msra.mxu0 0.0
    %1006 = vmatprep.subr.mxu0 0.0
    %1007 = vmatpush1.msra.mxu0 0.0
    %1008 = vmatprep.subr.mxu0 0.0
    %1009 = vmatpush1.msra.mxu0 0.0
    %1010 = vmatprep.subr.mxu0 0.0
    %1011 = vmatpush1.msra.mxu0 0.0
    %1012 = vmatprep.subr.mxu0 0.0
    %1013 = vmatpush1.msra.mxu0 0.0
    %1014 = vmatprep.subr.mxu0 0.0
    %1015 = vmatpush1.msra.mxu0 0.0
    %1016 = vmatprep.subr.mxu0 0.0
    %1017 = vmatpush1.msra.mxu0 0.0
    %1018 = vmatprep.subr.mxu0 0.0
    %1019 = vmatpush1.msra.mxu0 0.0
    %1020 = vmatprep.subr.mxu0 0.0
    %1021 = vmatpush1.msra.mxu0 0.0
    %1022 = vmatprep.subr.mxu0 0.0
    %1023 = vmatpush1.msra.mxu0 0.0
    %1024 = vmatprep.subr.mxu0 0.0
    %1025 = vmatpush1.msra.mxu0 0.0
    %1026 = vmatprep.mubr.f32.mxu0 0.0
    %1027 = vmatmul.mubr.f32.gmra.mrb[0].mxu0 %v960
    %v1028 = vpop.f32.mrb[0].mxu0
    %v1029 = vadd.f32 0.0, %v1028
    %v1030 = vpop.f32.mrb[0].mxu0
    %1031 = vdwg.mxu0
    %1033 = vrot.lane.b32.xlu0 %v883, 8
    %v1034 = vpop.permute.xlu0 %1033
    %1037 = vrot.lane.b32.xlu0 %v956, 16
    %v1038 = vpop.permute.xlu0 %1037
    %1041 = vrot.lane.b32.xlu0 %v1029, 24
    %v1042 = vpop.permute.xlu0 %1041
    %v1044 = vsel %vm395, %v810, %v1034
    %vm1045 = vcmask 130048
    %v1046 = vsel %vm1045, %v1044, %v1038
    %vm1047 = vcmask 195584
    %v1048 = vsel %vm1047, %v1046, %v1042
    %1050 = vrot.lane.b32.xlu0 %v196, 120
    %v1051 = vpop.permute.xlu0 %1050
    %1052 = vrot.lane.b32.xlu0 %v196, 112
    %v1053 = vpop.permute.xlu0 %1052
    %1054 = vrot.lane.b32.xlu0 %v196, 104
    %v1055 = vpop.permute.xlu0 %1054
    %1057 = vrot.lane.b32.xlu0 %v282, 120
    %v1058 = vpop.permute.xlu0 %1057
    %1059 = vrot.lane.b32.xlu0 %v282, 112
    %v1060 = vpop.permute.xlu0 %1059
    %1061 = vrot.lane.b32.xlu0 %v282, 104
    %v1062 = vpop.permute.xlu0 %1061
    %1064 = vrot.lane.b32.xlu0 %v368, 120
    %v1065 = vpop.permute.xlu0 %1064
    %1067 = vrot.lane.b32.xlu0 %v368, 112
    %v1068 = vpop.permute.xlu0 %1067
    %1070 = vrot.lane.b32.xlu0 %v368, 104
    %v1071 = vpop.permute.xlu0 %1070
    %v1073 = vsel %vm395, %v196, 0
    %v1075 = vsel %vm395, %v282, 0
    %1077 = vmatprep.subr.mxu0 0.0
    %1078 = vmatpush1.xpose.msra.mxu0 %v1075
    %1079 = vmatprep.subr.mxu0 0.0
    %1080 = vmatpush1.xpose.msra.mxu0 0.0
    %1081 = vmatprep.subr.mxu0 0.0
    %1082 = vmatpush1.xpose.msra.mxu0 0.0
    %1083 = vmatprep.subr.mxu0 0.0
    %1084 = vmatpush1.xpose.msra.mxu0 0.0
    %1085 = vmatprep.subr.mxu0 0.0
    %1086 = vmatpush1.xpose.msra.mxu0 0.0
    %1087 = vmatprep.subr.mxu0 0.0
    %1088 = vmatpush1.xpose.msra.mxu0 0.0
    %1089 = vmatprep.subr.mxu0 0.0
    %1090 = vmatpush1.xpose.msra.mxu0 0.0
    %1091 = vmatprep.subr.mxu0 0.0
    %1092 = vmatpush1.xpose.msra.mxu0 0.0
    %1093 = vmatprep.subr.mxu0 0.0
    %1094 = vmatpush1.xpose.msra.mxu0 0.0
    %1095 = vmatprep.subr.mxu0 0.0
    %1096 = vmatpush1.xpose.msra.mxu0 0.0
    %1097 = vmatprep.subr.mxu0 0.0
    %1098 = vmatpush1.xpose.msra.mxu0 0.0
    %1099 = vmatprep.subr.mxu0 0.0
    %1100 = vmatpush1.xpose.msra.mxu0 0.0
    %1101 = vmatprep.subr.mxu0 0.0
    %1102 = vmatpush1.xpose.msra.mxu0 0.0
    %1103 = vmatprep.subr.mxu0 0.0
    %1104 = vmatpush1.xpose.msra.mxu0 0.0
    %1105 = vmatprep.subr.mxu0 0.0
    %1106 = vmatpush1.xpose.msra.mxu0 0.0
    %1107 = vmatprep.subr.mxu0 0.0
    %1108 = vmatpush1.xpose.msra.mxu0 0.0
    %1109 = vmatprep.subr.mxu0 0.0
    %1110 = vmatpush1.xpose.msra.mxu0 0.0
    %1111 = vmatprep.subr.mxu0 0.0
    %1112 = vmatpush1.xpose.msra.mxu0 0.0
    %1113 = vmatprep.subr.mxu0 0.0
    %1114 = vmatpush1.xpose.msra.mxu0 0.0
    %1115 = vmatprep.subr.mxu0 0.0
    %1116 = vmatpush1.xpose.msra.mxu0 0.0
    %1117 = vmatprep.subr.mxu0 0.0
    %1118 = vmatpush1.xpose.msra.mxu0 0.0
    %1119 = vmatprep.subr.mxu0 0.0
    %1120 = vmatpush1.xpose.msra.mxu0 0.0
    %1121 = vmatprep.subr.mxu0 0.0
    %1122 = vmatpush1.xpose.msra.mxu0 0.0
    %1123 = vmatprep.subr.mxu0 0.0
    %1124 = vmatpush1.xpose.msra.mxu0 0.0
    %1125 = vmatprep.subr.mxu0 0.0
    %1126 = vmatpush1.xpose.msra.mxu0 0.0
    %1127 = vmatprep.subr.mxu0 0.0
    %1128 = vmatpush1.xpose.msra.mxu0 0.0
    %1129 = vmatprep.subr.mxu0 0.0
    %1130 = vmatpush1.xpose.msra.mxu0 0.0
    %1131 = vmatprep.subr.mxu0 0.0
    %1132 = vmatpush1.xpose.msra.mxu0 0.0
    %1133 = vmatprep.subr.mxu0 0.0
    %1134 = vmatpush1.xpose.msra.mxu0 0.0
    %1135 = vmatprep.subr.mxu0 0.0
    %1136 = vmatpush1.xpose.msra.mxu0 0.0
    %1137 = vmatprep.subr.mxu0 0.0
    %1138 = vmatpush1.xpose.msra.mxu0 0.0
    %1139 = vmatprep.subr.mxu0 0.0
    %1140 = vmatpush1.xpose.msra.mxu0 0.0
    %1141 = vmatprep.mubr.f32.mxu0 0.0
    %1142 = vmatmul.mubr.f32.gmra.mrb[0].mxu0 %v1073
    %v1143 = vpop.f32.mrb[0].mxu0
    %v1144 = vadd.f32 0.0, %v1143
    %v1145 = vpop.f32.mrb[0].mxu0
    %1146 = vdwg.mxu0
    %v1147 = vsel %vm395, %v1051, 0
    %v1149 = vsel %vm395, %v1058, 0
    %1151 = vmatprep.subr.mxu0 0.0
    %1152 = vmatpush1.xpose.msra.mxu0 %v1149
    %1153 = vmatprep.subr.mxu0 0.0
    %1154 = vmatpush1.xpose.msra.mxu0 0.0
    %1155 = vmatprep.subr.mxu0 0.0
    %1156 = vmatpush1.xpose.msra.mxu0 0.0
    %1157 = vmatprep.subr.mxu0 0.0
    %1158 = vmatpush1.xpose.msra.mxu0 0.0
    %1159 = vmatprep.subr.mxu0 0.0
    %1160 = vmatpush1.xpose.msra.mxu0 0.0
    %1161 = vmatprep.subr.mxu0 0.0
    %1162 = vmatpush1.xpose.msra.mxu0 0.0
    %1163 = vmatprep.subr.mxu0 0.0
    %1164 = vmatpush1.xpose.msra.mxu0 0.0
    %1165 = vmatprep.subr.mxu0 0.0
    %1166 = vmatpush1.xpose.msra.mxu0 0.0
    %1167 = vmatprep.subr.mxu0 0.0
    %1168 = vmatpush1.xpose.msra.mxu0 0.0
    %1169 = vmatprep.subr.mxu0 0.0
    %1170 = vmatpush1.xpose.msra.mxu0 0.0
    %1171 = vmatprep.subr.mxu0 0.0
    %1172 = vmatpush1.xpose.msra.mxu0 0.0
    %1173 = vmatprep.subr.mxu0 0.0
    %1174 = vmatpush1.xpose.msra.mxu0 0.0
    %1175 = vmatprep.subr.mxu0 0.0
    %1176 = vmatpush1.xpose.msra.mxu0 0.0
    %1177 = vmatprep.subr.mxu0 0.0
    %1178 = vmatpush1.xpose.msra.mxu0 0.0
    %1179 = vmatprep.subr.mxu0 0.0
    %1180 = vmatpush1.xpose.msra.mxu0 0.0
    %1181 = vmatprep.subr.mxu0 0.0
    %1182 = vmatpush1.xpose.msra.mxu0 0.0
    %1183 = vmatprep.subr.mxu0 0.0
    %1184 = vmatpush1.xpose.msra.mxu0 0.0
    %1185 = vmatprep.subr.mxu0 0.0
    %1186 = vmatpush1.xpose.msra.mxu0 0.0
    %1187 = vmatprep.subr.mxu0 0.0
    %1188 = vmatpush1.xpose.msra.mxu0 0.0
    %1189 = vmatprep.subr.mxu0 0.0
    %1190 = vmatpush1.xpose.msra.mxu0 0.0
    %1191 = vmatprep.subr.mxu0 0.0
    %1192 = vmatpush1.xpose.msra.mxu0 0.0
    %1193 = vmatprep.subr.mxu0 0.0
    %1194 = vmatpush1.xpose.msra.mxu0 0.0
    %1195 = vmatprep.subr.mxu0 0.0
    %1196 = vmatpush1.xpose.msra.mxu0 0.0
    %1197 = vmatprep.subr.mxu0 0.0
    %1198 = vmatpush1.xpose.msra.mxu0 0.0
    %1199 = vmatprep.subr.mxu0 0.0
    %1200 = vmatpush1.xpose.msra.mxu0 0.0
    %1201 = vmatprep.subr.mxu0 0.0
    %1202 = vmatpush1.xpose.msra.mxu0 0.0
    %1203 = vmatprep.subr.mxu0 0.0
    %1204 = vmatpush1.xpose.msra.mxu0 0.0
    %1205 = vmatprep.subr.mxu0 0.0
    %1206 = vmatpush1.xpose.msra.mxu0 0.0
    %1207 = vmatprep.subr.mxu0 0.0
    %1208 = vmatpush1.xpose.msra.mxu0 0.0
    %1209 = vmatprep.subr.mxu0 0.0
    %1210 = vmatpush1.xpose.msra.mxu0 0.0
    %1211 = vmatprep.subr.mxu0 0.0
    %1212 = vmatpush1.xpose.msra.mxu0 0.0
    %1213 = vmatprep.subr.mxu0 0.0
    %1214 = vmatpush1.xpose.msra.mxu0 0.0
    %1215 = vmatprep.mubr.f32.mxu0 0.0
    %1216 = vmatmul.mubr.f32.gmra.mrb[0].mxu0 %v1147
    %v1217 = vpop.f32.mrb[0].mxu0
    %v1218 = vadd.f32 0.0, %v1217
    %v1219 = vpop.f32.mrb[0].mxu0
    %1220 = vdwg.mxu0
    %v1221 = vsel %vm395, %v1053, 0
    %v1223 = vsel %vm395, %v1060, 0
    %1225 = vmatprep.subr.mxu0 0.0
    %1226 = vmatpush1.xpose.msra.mxu0 %v1223
    %1227 = vmatprep.subr.mxu0 0.0
    %1228 = vmatpush1.xpose.msra.mxu0 0.0
    %1229 = vmatprep.subr.mxu0 0.0
    %1230 = vmatpush1.xpose.msra.mxu0 0.0
    %1231 = vmatprep.subr.mxu0 0.0
    %1232 = vmatpush1.xpose.msra.mxu0 0.0
    %1233 = vmatprep.subr.mxu0 0.0
    %1234 = vmatpush1.xpose.msra.mxu0 0.0
    %1235 = vmatprep.subr.mxu0 0.0
    %1236 = vmatpush1.xpose.msra.mxu0 0.0
    %1237 = vmatprep.subr.mxu0 0.0
    %1238 = vmatpush1.xpose.msra.mxu0 0.0
    %1239 = vmatprep.subr.mxu0 0.0
    %1240 = vmatpush1.xpose.msra.mxu0 0.0
    %1241 = vmatprep.subr.mxu0 0.0
    %1242 = vmatpush1.xpose.msra.mxu0 0.0
    %1243 = vmatprep.subr.mxu0 0.0
    %1244 = vmatpush1.xpose.msra.mxu0 0.0
    %1245 = vmatprep.subr.mxu0 0.0
    %1246 = vmatpush1.xpose.msra.mxu0 0.0
    %1247 = vmatprep.subr.mxu0 0.0
    %1248 = vmatpush1.xpose.msra.mxu0 0.0
    %1249 = vmatprep.subr.mxu0 0.0
    %1250 = vmatpush1.xpose.msra.mxu0 0.0
    %1251 = vmatprep.subr.mxu0 0.0
    %1252 = vmatpush1.xpose.msra.mxu0 0.0
    %1253 = vmatprep.subr.mxu0 0.0
    %1254 = vmatpush1.xpose.msra.mxu0 0.0
    %1255 = vmatprep.subr.mxu0 0.0
    %1256 = vmatpush1.xpose.msra.mxu0 0.0
    %1257 = vmatprep.subr.mxu0 0.0
    %1258 = vmatpush1.xpose.msra.mxu0 0.0
    %1259 = vmatprep.subr.mxu0 0.0
    %1260 = vmatpush1.xpose.msra.mxu0 0.0
    %1261 = vmatprep.subr.mxu0 0.0
    %1262 = vmatpush1.xpose.msra.mxu0 0.0
    %1263 = vmatprep.subr.mxu0 0.0
    %1264 = vmatpush1.xpose.msra.mxu0 0.0
    %1265 = vmatprep.subr.mxu0 0.0
    %1266 = vmatpush1.xpose.msra.mxu0 0.0
    %1267 = vmatprep.subr.mxu0 0.0
    %1268 = vmatpush1.xpose.msra.mxu0 0.0
    %1269 = vmatprep.subr.mxu0 0.0
    %1270 = vmatpush1.xpose.msra.mxu0 0.0
    %1271 = vmatprep.subr.mxu0 0.0
    %1272 = vmatpush1.xpose.msra.mxu0 0.0
    %1273 = vmatprep.subr.mxu0 0.0
    %1274 = vmatpush1.xpose.msra.mxu0 0.0
    %1275 = vmatprep.subr.mxu0 0.0
    %1276 = vmatpush1.xpose.msra.mxu0 0.0
    %1277 = vmatprep.subr.mxu0 0.0
    %1278 = vmatpush1.xpose.msra.mxu0 0.0
    %1279 = vmatprep.subr.mxu0 0.0
    %1280 = vmatpush1.xpose.msra.mxu0 0.0
    %1281 = vmatprep.subr.mxu0 0.0
    %1282 = vmatpush1.xpose.msra.mxu0 0.0
    %1283 = vmatprep.subr.mxu0 0.0
    %1284 = vmatpush1.xpose.msra.mxu0 0.0
    %1285 = vmatprep.subr.mxu0 0.0
    %1286 = vmatpush1.xpose.msra.mxu0 0.0
    %1287 = vmatprep.subr.mxu0 0.0
    %1288 = vmatpush1.xpose.msra.mxu0 0.0
    %1289 = vmatprep.mubr.f32.mxu0 0.0
    %1290 = vmatmul.mubr.f32.gmra.mrb[0].mxu0 %v1221
    %v1291 = vpop.f32.mrb[0].mxu0
    %v1292 = vadd.f32 0.0, %v1291
    %v1293 = vpop.f32.mrb[0].mxu0
    %1294 = vdwg.mxu0
    %v1295 = vsel %vm395, %v1055, 0
    %v1297 = vsel %vm395, %v1062, 0
    %1299 = vmatprep.subr.mxu0 0.0
    %1300 = vmatpush1.xpose.msra.mxu0 %v1297
    %1301 = vmatprep.subr.mxu0 0.0
    %1302 = vmatpush1.xpose.msra.mxu0 0.0
    %1303 = vmatprep.subr.mxu0 0.0
    %1304 = vmatpush1.xpose.msra.mxu0 0.0
    %1305 = vmatprep.subr.mxu0 0.0
    %1306 = vmatpush1.xpose.msra.mxu0 0.0
    %1307 = vmatprep.subr.mxu0 0.0
    %1308 = vmatpush1.xpose.msra.mxu0 0.0
    %1309 = vmatprep.subr.mxu0 0.0
    %1310 = vmatpush1.xpose.msra.mxu0 0.0
    %1311 = vmatprep.subr.mxu0 0.0
    %1312 = vmatpush1.xpose.msra.mxu0 0.0
    %1313 = vmatprep.subr.mxu0 0.0
    %1314 = vmatpush1.xpose.msra.mxu0 0.0
    %1315 = vmatprep.subr.mxu0 0.0
    %1316 = vmatpush1.xpose.msra.mxu0 0.0
    %1317 = vmatprep.subr.mxu0 0.0
    %1318 = vmatpush1.xpose.msra.mxu0 0.0
    %1319 = vmatprep.subr.mxu0 0.0
    %1320 = vmatpush1.xpose.msra.mxu0 0.0
    %1321 = vmatprep.subr.mxu0 0.0
    %1322 = vmatpush1.xpose.msra.mxu0 0.0
    %1323 = vmatprep.subr.mxu0 0.0
    %1324 = vmatpush1.xpose.msra.mxu0 0.0
    %1325 = vmatprep.subr.mxu0 0.0
    %1326 = vmatpush1.xpose.msra.mxu0 0.0
    %1327 = vmatprep.subr.mxu0 0.0
    %1328 = vmatpush1.xpose.msra.mxu0 0.0
    %1329 = vmatprep.subr.mxu0 0.0
    %1330 = vmatpush1.xpose.msra.mxu0 0.0
    %1331 = vmatprep.subr.mxu0 0.0
    %1332 = vmatpush1.xpose.msra.mxu0 0.0
    %1333 = vmatprep.subr.mxu0 0.0
    %1334 = vmatpush1.xpose.msra.mxu0 0.0
    %1335 = vmatprep.subr.mxu0 0.0
    %1336 = vmatpush1.xpose.msra.mxu0 0.0
    %1337 = vmatprep.subr.mxu0 0.0
    %1338 = vmatpush1.xpose.msra.mxu0 0.0
    %1339 = vmatprep.subr.mxu0 0.0
    %1340 = vmatpush1.xpose.msra.mxu0 0.0
    %1341 = vmatprep.subr.mxu0 0.0
    %1342 = vmatpush1.xpose.msra.mxu0 0.0
    %1343 = vmatprep.subr.mxu0 0.0
    %1344 = vmatpush1.xpose.msra.mxu0 0.0
    %1345 = vmatprep.subr.mxu0 0.0
    %1346 = vmatpush1.xpose.msra.mxu0 0.0
    %1347 = vmatprep.subr.mxu0 0.0
    %1348 = vmatpush1.xpose.msra.mxu0 0.0
    %1349 = vmatprep.subr.mxu0 0.0
    %1350 = vmatpush1.xpose.msra.mxu0 0.0
    %1351 = vmatprep.subr.mxu0 0.0
    %1352 = vmatpush1.xpose.msra.mxu0 0.0
    %1353 = vmatprep.subr.mxu0 0.0
    %1354 = vmatpush1.xpose.msra.mxu0 0.0
    %1355 = vmatprep.subr.mxu0 0.0
    %1356 = vmatpush1.xpose.msra.mxu0 0.0
    %1357 = vmatprep.subr.mxu0 0.0
    %1358 = vmatpush1.xpose.msra.mxu0 0.0
    %1359 = vmatprep.subr.mxu0 0.0
    %1360 = vmatpush1.xpose.msra.mxu0 0.0
    %1361 = vmatprep.subr.mxu0 0.0
    %1362 = vmatpush1.xpose.msra.mxu0 0.0
    %1363 = vmatprep.mubr.f32.mxu0 0.0
    %1364 = vmatmul.mubr.f32.gmra.mrb[0].mxu0 %v1295
    %v1365 = vpop.f32.mrb[0].mxu0
    %v1366 = vadd.f32 0.0, %v1365
    %v1367 = vpop.f32.mrb[0].mxu0
    %1368 = vdwg.mxu0
    %v1369 = vmul.f32 %v1144, 0.35355338
    %v1370 = vmul.f32 %v1218, 0.35355338
    %v1371 = vmul.f32 %v1292, 0.35355338
    %v1372 = vmul.f32 %v1366, 0.35355338
    %v1373 = vsel %vm395, %v1369, -inf
    %1374 = vmax.xlane.f32.xlu0 %v1373
    %v1375 = vpop.xlane.xlu0 %1374
    %v1376 = vsel %vm395, %v1370, -inf
    %1377 = vmax.xlane.f32.xlu0 %v1376
    %v1378 = vpop.xlane.xlu0 %1377
    %v1379 = vsel %vm395, %v1371, -inf
    %1380 = vmax.xlane.f32.xlu0 %v1379
    %v1381 = vpop.xlane.xlu0 %1380
    %v1382 = vsel %vm395, %v1372, -inf
    %1383 = vmax.xlane.f32.xlu0 %v1382
    %v1384 = vpop.xlane.xlu0 %1383
    %v1385 = vsub.f32 %v1369, %v1375
    %v1386 = vsub.f32 %v1370, %v1378
    %v1387 = vsub.f32 %v1371, %v1381
    %v1388 = vsub.f32 %v1372, %v1384
    %v1389 = vmul.f32 %v1385, 1.442695
    %v1390 = vpow.pop %v1389
    %v1391 = vmul.f32 %v1386, 1.442695
    %v1392 = vpow.pop %v1391
    %v1393 = vmul.f32 %v1387, 1.442695
    %v1394 = vpow.pop %v1393
    %v1395 = vmul.f32 %v1388, 1.442695
    %v1396 = vpow.pop %v1395
    %v1397 = vsel %vm395, %v1390, 0.0
    %1398 = vadd.xlane.f32.xlu0 %v1397
    %v1399 = vpop.xlane.xlu0 %1398
    %v1400 = vsel %vm395, %v1392, 0.0
    %1401 = vadd.xlane.f32.xlu0 %v1400
    %v1402 = vpop.xlane.xlu0 %1401
    %v1403 = vsel %vm395, %v1394, 0.0
    %1404 = vadd.xlane.f32.xlu0 %v1403
    %v1405 = vpop.xlane.xlu0 %1404
    %v1406 = vsel %vm395, %v1396, 0.0
    %1407 = vadd.xlane.f32.xlu0 %v1406
    %v1408 = vpop.xlane.xlu0 %1407
    %v1409 = vrcp.pop %v1399
    %v1410 = vrcp.pop %v1402
    %v1411 = vrcp.pop %v1405
    %v1412 = vrcp.pop %v1408
    %v1413 = vmul.f32 %v1390, %v1409
    %v1414 = vmul.f32 %v1392, %v1410
    %v1415 = vmul.f32 %v1394, %v1411
    %v1416 = vmul.f32 %v1396, %v1412
    %v1418 = vsel %vm395, %v1413, 0
    %1420 = vmatprep.subr.mxu0 0.0
    %1421 = vmatpush1.msra.mxu0 %v368
    %1422 = vmatprep.subr.mxu0 0.0
    %1423 = vmatpush1.msra.mxu0 0.0
    %1424 = vmatprep.subr.mxu0 0.0
    %1425 = vmatpush1.msra.mxu0 0.0
    %1426 = vmatprep.subr.mxu0 0.0
    %1427 = vmatpush1.msra.mxu0 0.0
    %1428 = vmatprep.subr.mxu0 0.0
    %1429 = vmatpush1.msra.mxu0 0.0
    %1430 = vmatprep.subr.mxu0 0.0
    %1431 = vmatpush1.msra.mxu0 0.0
    %1432 = vmatprep.subr.mxu0 0.0
    %1433 = vmatpush1.msra.mxu0 0.0
    %1434 = vmatprep.subr.mxu0 0.0
    %1435 = vmatpush1.msra.mxu0 0.0
    %1436 = vmatprep.subr.mxu0 0.0
    %1437 = vmatpush1.msra.mxu0 0.0
    %1438 = vmatprep.subr.mxu0 0.0
    %1439 = vmatpush1.msra.mxu0 0.0
    %1440 = vmatprep.subr.mxu0 0.0
    %1441 = vmatpush1.msra.mxu0 0.0
    %1442 = vmatprep.subr.mxu0 0.0
    %1443 = vmatpush1.msra.mxu0 0.0
    %1444 = vmatprep.subr.mxu0 0.0
    %1445 = vmatpush1.msra.mxu0 0.0
    %1446 = vmatprep.subr.mxu0 0.0
    %1447 = vmatpush1.msra.mxu0 0.0
    %1448 = vmatprep.subr.mxu0 0.0
    %1449 = vmatpush1.msra.mxu0 0.0
    %1450 = vmatprep.subr.mxu0 0.0
    %1451 = vmatpush1.msra.mxu0 0.0
    %1452 = vmatprep.subr.mxu0 0.0
    %1453 = vmatpush1.msra.mxu0 0.0
    %1454 = vmatprep.subr.mxu0 0.0
    %1455 = vmatpush1.msra.mxu0 0.0
    %1456 = vmatprep.subr.mxu0 0.0
    %1457 = vmatpush1.msra.mxu0 0.0
    %1458 = vmatprep.subr.mxu0 0.0
    %1459 = vmatpush1.msra.mxu0 0.0
    %1460 = vmatprep.subr.mxu0 0.0
    %1461 = vmatpush1.msra.mxu0 0.0
    %1462 = vmatprep.subr.mxu0 0.0
    %1463 = vmatpush1.msra.mxu0 0.0
    %1464 = vmatprep.subr.mxu0 0.0
    %1465 = vmatpush1.msra.mxu0 0.0
    %1466 = vmatprep.subr.mxu0 0.0
    %1467 = vmatpush1.msra.mxu0 0.0
    %1468 = vmatprep.subr.mxu0 0.0
    %1469 = vmatpush1.msra.mxu0 0.0
    %1470 = vmatprep.subr.mxu0 0.0
    %1471 = vmatpush1.msra.mxu0 0.0
    %1472 = vmatprep.subr.mxu0 0.0
    %1473 = vmatpush1.msra.mxu0 0.0
    %1474 = vmatprep.subr.mxu0 0.0
    %1475 = vmatpush1.msra.mxu0 0.0
    %1476 = vmatprep.subr.mxu0 0.0
    %1477 = vmatpush1.msra.mxu0 0.0
    %1478 = vmatprep.subr.mxu0 0.0
    %1479 = vmatpush1.msra.mxu0 0.0
    %1480 = vmatprep.subr.mxu0 0.0
    %1481 = vmatpush1.msra.mxu0 0.0
    %1482 = vmatprep.subr.mxu0 0.0
    %1483 = vmatpush1.msra.mxu0 0.0
    %1484 = vmatprep.mubr.f32.mxu0 0.0
    %1485 = vmatmul.mubr.f32.gmra.mrb[0].mxu0 %v1418
    %v1486 = vpop.f32.mrb[0].mxu0
    %v1487 = vadd.f32 0.0, %v1486
    %v1488 = vpop.f32.mrb[0].mxu0
    %1489 = vdwg.mxu0
    %v1491 = vsel %vm395, %v1414, 0
    %1493 = vmatprep.subr.mxu0 0.0
    %1494 = vmatpush1.msra.mxu0 %v1065
    %1495 = vmatprep.subr.mxu0 0.0
    %1496 = vmatpush1.msra.mxu0 0.0
    %1497 = vmatprep.subr.mxu0 0.0
    %1498 = vmatpush1.msra.mxu0 0.0
    %1499 = vmatprep.subr.mxu0 0.0
    %1500 = vmatpush1.msra.mxu0 0.0
    %1501 = vmatprep.subr.mxu0 0.0
    %1502 = vmatpush1.msra.mxu0 0.0
    %1503 = vmatprep.subr.mxu0 0.0
    %1504 = vmatpush1.msra.mxu0 0.0
    %1505 = vmatprep.subr.mxu0 0.0
    %1506 = vmatpush1.msra.mxu0 0.0
    %1507 = vmatprep.subr.mxu0 0.0
    %1508 = vmatpush1.msra.mxu0 0.0
    %1509 = vmatprep.subr.mxu0 0.0
    %1510 = vmatpush1.msra.mxu0 0.0
    %1511 = vmatprep.subr.mxu0 0.0
    %1512 = vmatpush1.msra.mxu0 0.0
    %1513 = vmatprep.subr.mxu0 0.0
    %1514 = vmatpush1.msra.mxu0 0.0
    %1515 = vmatprep.subr.mxu0 0.0
    %1516 = vmatpush1.msra.mxu0 0.0
    %1517 = vmatprep.subr.mxu0 0.0
    %1518 = vmatpush1.msra.mxu0 0.0
    %1519 = vmatprep.subr.mxu0 0.0
    %1520 = vmatpush1.msra.mxu0 0.0
    %1521 = vmatprep.subr.mxu0 0.0
    %1522 = vmatpush1.msra.mxu0 0.0
    %1523 = vmatprep.subr.mxu0 0.0
    %1524 = vmatpush1.msra.mxu0 0.0
    %1525 = vmatprep.subr.mxu0 0.0
    %1526 = vmatpush1.msra.mxu0 0.0
    %1527 = vmatprep.subr.mxu0 0.0
    %1528 = vmatpush1.msra.mxu0 0.0
    %1529 = vmatprep.subr.mxu0 0.0
    %1530 = vmatpush1.msra.mxu0 0.0
    %1531 = vmatprep.subr.mxu0 0.0
    %1532 = vmatpush1.msra.mxu0 0.0
    %1533 = vmatprep.subr.mxu0 0.0
    %1534 = vmatpush1.msra.mxu0 0.0
    %1535 = vmatprep.subr.mxu0 0.0
    %1536 = vmatpush1.msra.mxu0 0.0
    %1537 = vmatprep.subr.mxu0 0.0
    %1538 = vmatpush1.msra.mxu0 0.0
    %1539 = vmatprep.subr.mxu0 0.0
    %1540 = vmatpush1.msra.mxu0 0.0
    %1541 = vmatprep.subr.mxu0 0.0
    %1542 = vmatpush1.msra.mxu0 0.0
    %1543 = vmatprep.subr.mxu0 0.0
    %1544 = vmatpush1.msra.mxu0 0.0
    %1545 = vmatprep.subr.mxu0 0.0
    %1546 = vmatpush1.msra.mxu0 0.0
    %1547 = vmatprep.subr.mxu0 0.0
    %1548 = vmatpush1.msra.mxu0 0.0
    %1549 = vmatprep.subr.mxu0 0.0
    %1550 = vmatpush1.msra.mxu0 0.0
    %1551 = vmatprep.subr.mxu0 0.0
    %1552 = vmatpush1.msra.mxu0 0.0
    %1553 = vmatprep.subr.mxu0 0.0
    %1554 = vmatpush1.msra.mxu0 0.0
    %1555 = vmatprep.subr.mxu0 0.0
    %1556 = vmatpush1.msra.mxu0 0.0
    %1557 = vmatprep.mubr.f32.mxu0 0.0
    %1558 = vmatmul.mubr.f32.gmra.mrb[0].mxu0 %v1491
    %v1559 = vpop.f32.mrb[0].mxu0
    %v1560 = vadd.f32 0.0, %v1559
    %v1561 = vpop.f32.mrb[0].mxu0
    %1562 = vdwg.mxu0
    %v1564 = vsel %vm395, %v1415, 0
    %1566 = vmatprep.subr.mxu0 0.0
    %1567 = vmatpush1.msra.mxu0 %v1068
    %1568 = vmatprep.subr.mxu0 0.0
    %1569 = vmatpush1.msra.mxu0 0.0
    %1570 = vmatprep.subr.mxu0 0.0
    %1571 = vmatpush1.msra.mxu0 0.0
    %1572 = vmatprep.subr.mxu0 0.0
    %1573 = vmatpush1.msra.mxu0 0.0
    %1574 = vmatprep.subr.mxu0 0.0
    %1575 = vmatpush1.msra.mxu0 0.0
    %1576 = vmatprep.subr.mxu0 0.0
    %1577 = vmatpush1.msra.mxu0 0.0
    %1578 = vmatprep.subr.mxu0 0.0
    %1579 = vmatpush1.msra.mxu0 0.0
    %1580 = vmatprep.subr.mxu0 0.0
    %1581 = vmatpush1.msra.mxu0 0.0
    %1582 = vmatprep.subr.mxu0 0.0
    %1583 = vmatpush1.msra.mxu0 0.0
    %1584 = vmatprep.subr.mxu0 0.0
    %1585 = vmatpush1.msra.mxu0 0.0
    %1586 = vmatprep.subr.mxu0 0.0
    %1587 = vmatpush1.msra.mxu0 0.0
    %1588 = vmatprep.subr.mxu0 0.0
    %1589 = vmatpush1.msra.mxu0 0.0
    %1590 = vmatprep.subr.mxu0 0.0
    %1591 = vmatpush1.msra.mxu0 0.0
    %1592 = vmatprep.subr.mxu0 0.0
    %1593 = vmatpush1.msra.mxu0 0.0
    %1594 = vmatprep.subr.mxu0 0.0
    %1595 = vmatpush1.msra.mxu0 0.0
    %1596 = vmatprep.subr.mxu0 0.0
    %1597 = vmatpush1.msra.mxu0 0.0
    %1598 = vmatprep.subr.mxu0 0.0
    %1599 = vmatpush1.msra.mxu0 0.0
    %1600 = vmatprep.subr.mxu0 0.0
    %1601 = vmatpush1.msra.mxu0 0.0
    %1602 = vmatprep.subr.mxu0 0.0
    %1603 = vmatpush1.msra.mxu0 0.0
    %1604 = vmatprep.subr.mxu0 0.0
    %1605 = vmatpush1.msra.mxu0 0.0
    %1606 = vmatprep.subr.mxu0 0.0
    %1607 = vmatpush1.msra.mxu0 0.0
    %1608 = vmatprep.subr.mxu0 0.0
    %1609 = vmatpush1.msra.mxu0 0.0
    %1610 = vmatprep.subr.mxu0 0.0
    %1611 = vmatpush1.msra.mxu0 0.0
    %1612 = vmatprep.subr.mxu0 0.0
    %1613 = vmatpush1.msra.mxu0 0.0
    %1614 = vmatprep.subr.mxu0 0.0
    %1615 = vmatpush1.msra.mxu0 0.0
    %1616 = vmatprep.subr.mxu0 0.0
    %1617 = vmatpush1.msra.mxu0 0.0
    %1618 = vmatprep.subr.mxu0 0.0
    %1619 = vmatpush1.msra.mxu0 0.0
    %1620 = vmatprep.subr.mxu0 0.0
    %1621 = vmatpush1.msra.mxu0 0.0
    %1622 = vmatprep.subr.mxu0 0.0
    %1623 = vmatpush1.msra.mxu0 0.0
    %1624 = vmatprep.subr.mxu0 0.0
    %1625 = vmatpush1.msra.mxu0 0.0
    %1626 = vmatprep.subr.mxu0 0.0
    %1627 = vmatpush1.msra.mxu0 0.0
    %1628 = vmatprep.subr.mxu0 0.0
    %1629 = vmatpush1.msra.mxu0 0.0
    %1630 = vmatprep.mubr.f32.mxu0 0.0
    %1631 = vmatmul.mubr.f32.gmra.mrb[0].mxu0 %v1564
    %v1632 = vpop.f32.mrb[0].mxu0
    %v1633 = vadd.f32 0.0, %v1632
    %v1634 = vpop.f32.mrb[0].mxu0
    %1635 = vdwg.mxu0
    %v1637 = vsel %vm395, %v1416, 0
    %1639 = vmatprep.subr.mxu0 0.0
    %1640 = vmatpush1.msra.mxu0 %v1071
    %1641 = vmatprep.subr.mxu0 0.0
    %1642 = vmatpush1.msra.mxu0 0.0
    %1643 = vmatprep.subr.mxu0 0.0
    %1644 = vmatpush1.msra.mxu0 0.0
    %1645 = vmatprep.subr.mxu0 0.0
    %1646 = vmatpush1.msra.mxu0 0.0
    %1647 = vmatprep.subr.mxu0 0.0
    %1648 = vmatpush1.msra.mxu0 0.0
    %1649 = vmatprep.subr.mxu0 0.0
    %1650 = vmatpush1.msra.mxu0 0.0
    %1651 = vmatprep.subr.mxu0 0.0
    %1652 = vmatpush1.msra.mxu0 0.0
    %1653 = vmatprep.subr.mxu0 0.0
    %1654 = vmatpush1.msra.mxu0 0.0
    %1655 = vmatprep.subr.mxu0 0.0
    %1656 = vmatpush1.msra.mxu0 0.0
    %1657 = vmatprep.subr.mxu0 0.0
    %1658 = vmatpush1.msra.mxu0 0.0
    %1659 = vmatprep.subr.mxu0 0.0
    %1660 = vmatpush1.msra.mxu0 0.0
    %1661 = vmatprep.subr.mxu0 0.0
    %1662 = vmatpush1.msra.mxu0 0.0
    %1663 = vmatprep.subr.mxu0 0.0
    %1664 = vmatpush1.msra.mxu0 0.0
    %1665 = vmatprep.subr.mxu0 0.0
    %1666 = vmatpush1.msra.mxu0 0.0
    %1667 = vmatprep.subr.mxu0 0.0
    %1668 = vmatpush1.msra.mxu0 0.0
    %1669 = vmatprep.subr.mxu0 0.0
    %1670 = vmatpush1.msra.mxu0 0.0
    %1671 = vmatprep.subr.mxu0 0.0
    %1672 = vmatpush1.msra.mxu0 0.0
    %1673 = vmatprep.subr.mxu0 0.0
    %1674 = vmatpush1.msra.mxu0 0.0
    %1675 = vmatprep.subr.mxu0 0.0
    %1676 = vmatpush1.msra.mxu0 0.0
    %1677 = vmatprep.subr.mxu0 0.0
    %1678 = vmatpush1.msra.mxu0 0.0
    %1679 = vmatprep.subr.mxu0 0.0
    %1680 = vmatpush1.msra.mxu0 0.0
    %1681 = vmatprep.subr.mxu0 0.0
    %1682 = vmatpush1.msra.mxu0 0.0
    %1683 = vmatprep.subr.mxu0 0.0
    %1684 = vmatpush1.msra.mxu0 0.0
    %1685 = vmatprep.subr.mxu0 0.0
    %1686 = vmatpush1.msra.mxu0 0.0
    %1687 = vmatprep.subr.mxu0 0.0
    %1688 = vmatpush1.msra.mxu0 0.0
    %1689 = vmatprep.subr.mxu0 0.0
    %1690 = vmatpush1.msra.mxu0 0.0
    %1691 = vmatprep.subr.mxu0 0.0
    %1692 = vmatpush1.msra.mxu0 0.0
    %1693 = vmatprep.subr.mxu0 0.0
    %1694 = vmatpush1.msra.mxu0 0.0
    %1695 = vmatprep.subr.mxu0 0.0
    %1696 = vmatpush1.msra.mxu0 0.0
    %1697 = vmatprep.subr.mxu0 0.0
    %1698 = vmatpush1.msra.mxu0 0.0
    %1699 = vmatprep.subr.mxu0 0.0
    %1700 = vmatpush1.msra.mxu0 0.0
    %1701 = vmatprep.subr.mxu0 0.0
    %1702 = vmatpush1.msra.mxu0 0.0
    %1703 = vmatprep.mubr.f32.mxu0 0.0
    %1704 = vmatmul.mubr.f32.gmra.mrb[0].mxu0 %v1637
    %v1705 = vpop.f32.mrb[0].mxu0
    %v1706 = vadd.f32 0.0, %v1705
    %v1707 = vpop.f32.mrb[0].mxu0
    %1708 = vdwg.mxu0
    %1710 = vrot.lane.b32.xlu0 %v1560, 8
    %v1711 = vpop.permute.xlu0 %1710
    %1714 = vrot.lane.b32.xlu0 %v1633, 16
    %v1715 = vpop.permute.xlu0 %1714
    %1718 = vrot.lane.b32.xlu0 %v1706, 24
    %v1719 = vpop.permute.xlu0 %1718
    %v1721 = vsel %vm395, %v1487, %v1711
    %v1722 = vsel %vm1045, %v1721, %v1715
    %v1723 = vsel %vm1047, %v1722, %v1719
    %1724 = vst.msk [vmem:[#allocation12] sm:$0xff] %vm395, %v736
    %1725 = vst.msk [vmem:[#allocation12 + $0x8] sm:$0xff] %vm395, %v737
    %1726 = vst.msk [vmem:[#allocation12 + $0x10] sm:$0xff] %vm395, %v738
    %1727 = vst.msk [vmem:[#allocation12 + $0x18] sm:$0xff] %vm395, %v739
    %1728 = vst.msk [vmem:[#allocation12 + $0x20] sm:$0xff] %vm395, %v1413
    %1729 = vst.msk [vmem:[#allocation12 + $0x28] sm:$0xff] %vm395, %v1414
    %1730 = vst.msk [vmem:[#allocation12 + $0x30] sm:$0xff] %vm395, %v1415
    %1731 = vst.msk [vmem:[#allocation12 + $0x38] sm:$0xff] %vm395, %v1416
    %v1732 = vld [vmem:[#allocation10] sm:$0xff]
    %v1733 = vld [vmem:[#allocation10 + $0x8] sm:$0xff]
    %v1734 = vld [vmem:[#allocation10 + $0x10] sm:$0xff]
    %v1735 = vld [vmem:[#allocation10 + $0x18] sm:$0xff]
    %v1736 = vld [vmem:[%s8] sm:$0x1]
    %v1738 = vlaneseq
    %v1739 = vshrl.u32 %v1738, 7
    %v1740 = vsub.s32 0, %v1739
    %v1741 = vrot.slane %v1736, %v1740
    %v1744 = vsel %vm117, %v1048, 0
    %v1747 = vsel %vm117, %v1723, 0
    %1749 = vmatprep.subr.mxu0 0.0
    %1750 = vmatpush1.msra.mxu0 %v1732
    %1751 = vmatprep.subr.mxu0 0.0
    %1752 = vmatpush1.msra.mxu0 %v1733
    %1753 = vmatprep.subr.mxu0 0.0
    %1754 = vmatpush1.msra.mxu0 %v1734
    %1755 = vmatprep.subr.mxu0 0.0
    %1756 = vmatpush1.msra.mxu0 %v1735
    %1757 = vmatprep.subr.mxu0 0.0
    %1758 = vmatpush1.msra.mxu0 0.0
    %1759 = vmatprep.subr.mxu0 0.0
    %1760 = vmatpush1.msra.mxu0 0.0
    %1761 = vmatprep.subr.mxu0 0.0
    %1762 = vmatpush1.msra.mxu0 0.0
    %1763 = vmatprep.subr.mxu0 0.0
    %1764 = vmatpush1.msra.mxu0 0.0
    %1765 = vmatprep.subr.mxu0 0.0
    %1766 = vmatpush1.msra.mxu0 0.0
    %1767 = vmatprep.subr.mxu0 0.0
    %1768 = vmatpush1.msra.mxu0 0.0
    %1769 = vmatprep.subr.mxu0 0.0
    %1770 = vmatpush1.msra.mxu0 0.0
    %1771 = vmatprep.subr.mxu0 0.0
    %1772 = vmatpush1.msra.mxu0 0.0
    %1773 = vmatprep.subr.mxu0 0.0
    %1774 = vmatpush1.msra.mxu0 0.0
    %1775 = vmatprep.subr.mxu0 0.0
    %1776 = vmatpush1.msra.mxu0 0.0
    %1777 = vmatprep.subr.mxu0 0.0
    %1778 = vmatpush1.msra.mxu0 0.0
    %1779 = vmatprep.subr.mxu0 0.0
    %1780 = vmatpush1.msra.mxu0 0.0
    %1781 = vmatprep.subr.mxu0 0.0
    %1782 = vmatpush1.msra.mxu0 0.0
    %1783 = vmatprep.subr.mxu0 0.0
    %1784 = vmatpush1.msra.mxu0 0.0
    %1785 = vmatprep.subr.mxu0 0.0
    %1786 = vmatpush1.msra.mxu0 0.0
    %1787 = vmatprep.subr.mxu0 0.0
    %1788 = vmatpush1.msra.mxu0 0.0
    %1789 = vmatprep.subr.mxu0 0.0
    %1790 = vmatpush1.msra.mxu0 0.0
    %1791 = vmatprep.subr.mxu0 0.0
    %1792 = vmatpush1.msra.mxu0 0.0
    %1793 = vmatprep.subr.mxu0 0.0
    %1794 = vmatpush1.msra.mxu0 0.0
    %1795 = vmatprep.subr.mxu0 0.0
    %1796 = vmatpush1.msra.mxu0 0.0
    %1797 = vmatprep.subr.mxu0 0.0
    %1798 = vmatpush1.msra.mxu0 0.0
    %1799 = vmatprep.subr.mxu0 0.0
    %1800 = vmatpush1.msra.mxu0 0.0
    %1801 = vmatprep.subr.mxu0 0.0
    %1802 = vmatpush1.msra.mxu0 0.0
    %1803 = vmatprep.subr.mxu0 0.0
    %1804 = vmatpush1.msra.mxu0 0.0
    %1805 = vmatprep.subr.mxu0 0.0
    %1806 = vmatpush1.msra.mxu0 0.0
    %1807 = vmatprep.subr.mxu0 0.0
    %1808 = vmatpush1.msra.mxu0 0.0
    %1809 = vmatprep.subr.mxu0 0.0
    %1810 = vmatpush1.msra.mxu0 0.0
    %1811 = vmatprep.subr.mxu0 0.0
    %1812 = vmatpush1.msra.mxu0 0.0
    %1813 = vmatprep.mubr.f32.mxu0 0.0
    %1814 = vmatmul.mubr.f32.gmra.mrb[0].mxu0 %v1744
    %v1815 = vpop.f32.mrb[0].mxu0
    %v1816 = vadd.f32 %v1741, %v1815
    %v1817 = vpop.f32.mrb[0].mxu0
    %1818 = vmatprep.mubr.f32.mxu0 0.0
    %1819 = vmatmul.mubr.f32.gmra.mrb[0].mxu0 %v1747
    %v1820 = vpop.f32.mrb[0].mxu0
    %v1821 = vadd.f32 %v1741, %v1820
    %v1822 = vpop.f32.mrb[0].mxu0
    %1823 = vdwg.mxu0
    %1824 = vst.msk [vmem:[#allocation11] sm:$0xff] %vm117, %v1816
    %1825 = vst.msk [vmem:[#allocation11 + $0x8] sm:$0xff] %vm117, %v1821
    // Predicated region
    $region58: #{tpu_custom_call.1} parent=1 // pred_check
      _
    $region59: #{tpu_custom_call.1} parent=1 // pred_check_branch
      %1827 = sbr.rel (0) target = $region61
    $region60: #{tpu_custom_call.1} parent=1 // pred_region
      %s1829 = ssub.s32 256, 256
      %1830 = vsyncadd [#allocation4], %s1829
      %s1831 = sshll.u32 [#allocation11], 4
      %s1832 = int_to_ptr.vmem [resolvable:$true] %s1831
      %1837 = dma.vmem_to_hbm [thread:$0]  %s1832, 256, %s9, [#allocation4], 128, 128, 8
    $region61: #{tpu_custom_call.1} parent=1 // pred_fallthru
      _
    // Predicated region
    $region62: #{tpu_custom_call.1} parent=1 // pred_check
      _
    $region63: #{tpu_custom_call.1} parent=1 // pred_check_branch
      %1839 = sbr.rel (0) target = $region65
    $region64: #{tpu_custom_call.1} parent=1 // pred_region
      %s1841 = ssub.s32 1024, 1024
      %1842 = vsyncadd [#allocation13], %s1841
      %s1843 = sshll.u32 [#allocation12], 4
      %s1844 = int_to_ptr.vmem [resolvable:$true] %s1843
      %1849 = dma.vmem_to_hbm [thread:$0]  %s1844, 1024, %s10, [#allocation13], 128, 128, 8
    $region65: #{tpu_custom_call.1} parent=1 // pred_fallthru
      _
    // Predicated region
    $region66: #{tpu_custom_call.1} parent=1 // pred_check
      _
    $region67: #{tpu_custom_call.1} parent=1 // pred_check_branch
      %1851 = sbr.rel (0) target = $region69
    $region68: #{tpu_custom_call.1} parent=1 // pred_region
      %1852 = dma.done [#allocation4], 256
    $region69: #{tpu_custom_call.1} parent=1 // pred_fallthru
      _
    // Predicated region
    $region70: #{tpu_custom_call.1} parent=1 // pred_check
      _
    $region71: #{tpu_custom_call.1} parent=1 // pred_check_branch
      %1854 = sbr.rel (0) target = $region73
    $region72: #{tpu_custom_call.1} parent=1 // pred_region
      %1855 = dma.done [#allocation13], 1024
    $region73: #{tpu_custom_call.1} parent=1 // pred_fallthru
      _
    %1856 = vsyncpa [#allocation3], 1
    %1857 = vsyncpa [#allocation6], 1
    %1858 = vsyncpa [#allocation9], 1
    %1859 = vsyncpa [#allocation4], 1
    %1860 = vsyncpa [#allocation13], 1

</llo_original>
